<compile_context>
chip_gen: v7x
topology: tpu7x:2x2x1
jax: 0.10.0
libtpu: 0.0.40
codegen_flags: <defaults>
</compile_context>

<pallas_src>
import functools

import jax
import jax.numpy as jnp
from jax import lax
from jax.experimental import pallas as pl
from jax.experimental.pallas import tpu as pltpu

EPS = 1e-5            # nn.BatchNorm2d default eps
SLOPE = 0.2           # LeakyReLU(0.2)
LANE = 128            # TPU lane width: keep output channels lane-dense
VMEM_LIMIT = 64 * 1024 * 1024


def _round_up(x, m):
    return (x + m - 1) // m * m


# ----------------------------------------------------------------------------
# Pallas kernels (hot path)
# ----------------------------------------------------------------------------

def _matmul_act_kernel(x_ref, w_ref, o_ref, *, apply_act):
    """One (tm, tn) tile of out = x @ w, optionally + LeakyReLU(0.2)."""
    acc = jnp.dot(x_ref[...], w_ref[...], preferred_element_type=jnp.float32)
    if apply_act:
        acc = jnp.where(acc >= 0.0, acc, SLOPE * acc)
    o_ref[...] = acc.astype(o_ref.dtype)


def _matmul_stats_kernel(x_ref, w_ref, y_ref, s_ref):
    """Tile of y = x @ w (bf16 store) plus f32 per-channel sum / sum-of-sq."""
    y = jnp.dot(x_ref[...], w_ref[...], preferred_element_type=jnp.float32)
    y_ref[...] = y.astype(y_ref.dtype)
    ssum = jnp.sum(y, axis=0, keepdims=True)          # (1, tn) f32
    ssq = jnp.sum(y * y, axis=0, keepdims=True)       # (1, tn) f32
    rows = lax.broadcasted_iota(jnp.int32, s_ref.shape, 0)
    s_ref[...] = jnp.where(
        rows == 0, jnp.broadcast_to(ssum, s_ref.shape),
        jnp.where(rows == 1, jnp.broadcast_to(ssq, s_ref.shape), 0.0))


def _bn_lrelu_kernel(y_ref, scale_ref, shift_ref, o_ref):
    """Tile of LeakyReLU(y * scale + shift) (BN affine already folded)."""
    yn = y_ref[...].astype(jnp.float32) * scale_ref[...] + shift_ref[...]
    o_ref[...] = jnp.where(yn >= 0.0, yn, SLOPE * yn).astype(o_ref.dtype)


# ----------------------------------------------------------------------------
# pallas_call wrappers (tiled, pipelined)
# ----------------------------------------------------------------------------

def _compiler_params():
    return pltpu.CompilerParams(
        dimension_semantics=("parallel", "parallel"),
        vmem_limit_bytes=VMEM_LIMIT)


def pallas_matmul_act(x, w, *, apply_act, out_dtype, tm, tn):
    M, K = x.shape
    _, N = w.shape
    cost = pl.CostEstimate(
        flops=2 * M * N * K, transcendentals=0,
        bytes_accessed=int(x.size * x.dtype.itemsize + w.size * w.dtype.itemsize
                           + M * N * jnp.dtype(out_dtype).itemsize))
    return pl.pallas_call(
        functools.partial(_matmul_act_kernel, apply_act=apply_act),
        out_shape=jax.ShapeDtypeStruct((M, N), out_dtype),
        grid_spec=pltpu.PrefetchScalarGridSpec(
            num_scalar_prefetch=0,
            grid=(M // tm, N // tn),
            in_specs=[pl.BlockSpec((tm, K), lambda i, j: (i, 0)),
                      pl.BlockSpec((K, tn), lambda i, j: (0, j))],
            out_specs=pl.BlockSpec((tm, tn), lambda i, j: (i, j))),
        compiler_params=_compiler_params(),
        cost_estimate=cost,
    )(x, w)


def pallas_matmul_stats(x, w, *, y_dtype, tm, tn):
    M, K = x.shape
    _, N = w.shape
    mt, nt = M // tm, N // tn
    cost = pl.CostEstimate(
        flops=2 * M * N * K + 3 * M * N, transcendentals=0,
        bytes_accessed=int(x.size * x.dtype.itemsize + w.size * w.dtype.itemsize
                           + M * N * jnp.dtype(y_dtype).itemsize
                           + 8 * mt * N * 4))
    return pl.pallas_call(
        _matmul_stats_kernel,
        out_shape=(jax.ShapeDtypeStruct((M, N), y_dtype),
                   jax.ShapeDtypeStruct((8 * mt, N), jnp.float32)),
        grid_spec=pltpu.PrefetchScalarGridSpec(
            num_scalar_prefetch=0,
            grid=(mt, nt),
            in_specs=[pl.BlockSpec((tm, K), lambda i, j: (i, 0)),
                      pl.BlockSpec((K, tn), lambda i, j: (0, j))],
            out_specs=(pl.BlockSpec((tm, tn), lambda i, j: (i, j)),
                       pl.BlockSpec((8, tn), lambda i, j: (i, j)))),
        compiler_params=_compiler_params(),
        cost_estimate=cost,
    )(x, w)


def pallas_bn_lrelu(y, scale, shift, *, out_dtype, tm, tn):
    M, N = y.shape
    cost = pl.CostEstimate(
        flops=3 * M * N, transcendentals=0,
        bytes_accessed=int(M * N * y.dtype.itemsize + 2 * N * 4
                           + M * N * jnp.dtype(out_dtype).itemsize))
    return pl.pallas_call(
        _bn_lrelu_kernel,
        out_shape=jax.ShapeDtypeStruct((M, N), out_dtype),
        grid_spec=pltpu.PrefetchScalarGridSpec(
            num_scalar_prefetch=0,
            grid=(M // tm, N // tn),
            in_specs=[pl.BlockSpec((tm, tn), lambda i, j: (i, j)),
                      pl.BlockSpec((1, tn), lambda i, j: (0, j)),
                      pl.BlockSpec((1, tn), lambda i, j: (0, j))],
            out_specs=pl.BlockSpec((tm, tn), lambda i, j: (i, j))),
        compiler_params=_compiler_params(),
        cost_estimate=cost,
    )(y, scale, shift)


# ----------------------------------------------------------------------------
# Glue: im2col, padding, layer wrappers, parameter init (plain JAX)
# ----------------------------------------------------------------------------

def _im2col(x_nhwc, k, stride):
    """(N,H,W,C) -> (N*Ho*Wo, k*k*C), patch features ordered (kh, kw, c)."""
    # TODO(synk): fold the k*k taps into the kernel's reduction loop (strided
    # pl.ds windows) to avoid materializing the expanded patch matrix in HBM.
    N, H, W, C = x_nhwc.shape
    Ho = (H - k) // stride + 1
    Wo = (W - k) // stride + 1
    cols = []
    for kh in range(k):
        for kw in range(k):
            cols.append(
                x_nhwc[:, kh:kh + stride * (Ho - 1) + 1:stride,
                          kw:kw + stride * (Wo - 1) + 1:stride, :])
    patches = jnp.stack(cols, axis=3)                 # (N, Ho, Wo, k*k, C)
    return patches.reshape(N * Ho * Wo, k * k * C), (N, Ho, Wo)


def _weight_to_mat(w_oihw):
    """PyTorch (Cout, Cin, kH, kW) -> (kH*kW*Cin, Cout) bf16, matching im2col."""
    Cout, Cin, kH, kW = w_oihw.shape
    w = jnp.transpose(w_oihw, (2, 3, 1, 0)).reshape(kH * kW * Cin, Cout)
    return w.astype(jnp.bfloat16)


def _choose_tiles(M, K, Cout):
    """Tile sizes keeping the double-buffered working set VMEM-friendly."""
    n_pad = _round_up(Cout, LANE)
    tn = 256 if (n_pad % 256 == 0) else LANE
    tm = 512
    while tm > 64 and tm * K * 2 * 2 > 8 * 1024 * 1024:   # bf16 x-tile, 2 buffers
        tm //= 2
    if M < tm:
        tm = _round_up(max(M, 1), 8)
    m_pad = _round_up(M, tm)
    return tm, tn, m_pad, n_pad


def _pad2d(a, rows, cols):
    r, c = a.shape
    if (r, c) == (rows, cols):
        return a
    return jnp.pad(a, ((0, rows - r), (0, cols - c)))


def _conv_block(x_nhwc, w_oihw, bn):
    """Conv2d(4, stride 2, pad 1, no bias) [+ BN (batch stats)] + LeakyReLU."""
    Cout, Cin, kH, kW = w_oihw.shape
    xp = jnp.pad(x_nhwc, ((0, 0), (1, 1), (1, 1), (0, 0)))
    patches, (N, Ho, Wo) = _im2col(xp, kH, 2)         # bf16 patches
    M, K = patches.shape
    w_mat = _weight_to_mat(w_oihw)                    # (K, Cout) bf16
    tm, tn, m_pad, n_pad = _choose_tiles(M, K, Cout)
    x_p = _pad2d(patches, m_pad, K)                   # zero rows -> zero stats
    w_p = _pad2d(w_mat, K, n_pad)                     # zero cols -> lane-dense

    if bn is None:
        out = pallas_matmul_act(x_p, w_p, apply_act=True,
                                out_dtype=jnp.bfloat16, tm=tm, tn=tn)
    else:
        gamma, beta = bn
        # Pass 1: matmul, bf16 activations + f32 per-tile channel statistics.
        y, stats = pallas_matmul_stats(x_p, w_p, y_dtype=jnp.bfloat16,
                                       tm=tm, tn=tn)
        stats = stats.reshape(m_pad // tm, 8, n_pad)
        ssum = jnp.sum(stats[:, 0, :], axis=0)
        ssq = jnp.sum(stats[:, 1, :], axis=0)
        cnt = jnp.float32(M)                          # true N*Ho*Wo rows
        mean = ssum / cnt
        var = jnp.maximum(ssq / cnt - mean * mean, 0.0)   # biased (training) var
        scale = jnp.pad(gamma, (0, n_pad - Cout)) * lax.rsqrt(var + EPS)
        shift = jnp.pad(beta, (0, n_pad - Cout)) - mean * scale
        # Pass 2: normalize (BN affine folded into scale/shift) + LeakyReLU.
        out = pallas_bn_lrelu(y, scale.reshape(1, n_pad), shift.reshape(1, n_pad),
                              out_dtype=jnp.bfloat16, tm=tm, tn=tn)
    return out[:M, :Cout].reshape(N, Ho, Wo, Cout)


def _fc_block(x_nhwc, w_oihw):
    """Final Conv2d(nf, nOut, kernel=sizeX, bias=False) -> (N, nOut, 1, 1)."""
    Cout, Cin, kH, kW = w_oihw.shape
    N, H, W, C = x_nhwc.shape
    assert (H, W, C) == (kH, kW, Cin)
    x_mat = x_nhwc.reshape(N, H * W * C)              # (h, w, c) ordering, bf16
    w_mat = _weight_to_mat(w_oihw)                    # (kh, kw, cin) ordering
    M, K = x_mat.shape
    tm, tn, m_pad, n_pad = _choose_tiles(M, K, Cout)  # pads tiny batch up to 8
    out = pallas_matmul_act(_pad2d(x_mat, m_pad, K), _pad2d(w_mat, K, n_pad),
                            apply_act=False, out_dtype=jnp.float32, tm=tm, tn=tn)
    return out[:N, :Cout].reshape(N, Cout, 1, 1)


def init_params(key, nIn=3, nOut=1024, nf=64, nLayer=4, sizeX=64):
    """Deterministic synthetic parameters with the exact module shapes."""
    params = {"convs": [], "bn": []}
    s = sizeX // 2
    key, k0 = jax.random.split(key)
    params["convs"].append(0.02 * jax.random.normal(k0, (nf, nIn, 4, 4), jnp.float32))
    params["bn"].append(None)
    for _ in range(1, nLayer):
        s = s // 2
        key, kw, kg = jax.random.split(key, 3)
        params["convs"].append(
            0.02 * jax.random.normal(kw, (nf * 2, nf, 4, 4), jnp.float32))
        gamma = 1.0 + 0.02 * jax.random.normal(kg, (nf * 2,), jnp.float32)
        beta = jnp.zeros((nf * 2,), jnp.float32)
        params["bn"].append((gamma, beta))
        nf = nf * 2
    key, kf = jax.random.split(key)
    params["fc"] = 0.02 * jax.random.normal(kf, (nOut, nf, s, s), jnp.float32)
    return params


def dc_discriminator_forward(x_nchw, params):
    """Forward of _dcDiscriminator: input NCHW, output (N, nOut, 1, 1)."""
    h = jnp.transpose(x_nchw, (0, 2, 3, 1)).astype(jnp.bfloat16)   # NHWC, bf16 MXU operands
    for w, bn in zip(params["convs"], params["bn"]):
        h = _conv_block(h, w, bn)
    return _fc_block(h, params["fc"])


# ----------------------------------------------------------------------------
# Pure-JAX reference (f32 lax.conv) for correctness checking
# ----------------------------------------------------------------------------

def reference_forward(x_nchw, params):
    dn = ("NCHW", "OIHW", "NCHW")
    h = x_nchw
    for w, bn in zip(params["convs"], params["bn"]):
        h = lax.conv_general_dilated(h, w, (2, 2), ((1, 1), (1, 1)),
                                     dimension_numbers=dn)
        if bn is not None:
            gamma, beta = bn
            mean = jnp.mean(h, axis=(0, 2, 3), keepdims=True)
            var = jnp.mean(jnp.square(h - mean), axis=(0, 2, 3), keepdims=True)
            h = (h - mean) / jnp.sqrt(var + EPS)
            h = h * gamma.reshape(1, -1, 1, 1) + beta.reshape(1, -1, 1, 1)
        h = jnp.where(h >= 0, h, SLOPE * h)
    return lax.conv_general_dilated(h, params["fc"], (1, 1), "VALID",
                                    dimension_numbers=dn)


if __name__ == "__main__":
    # Small config consistent with the module: nLayer=3 strided convs halve
    # 16 -> 8 -> 4 -> 2, then the "FC" conv (kernel=2) maps to 1x1.
    nIn, nOut, nf, nLayer, sizeX, batch = 3, 64, 8, 3, 16, 2

    key = jax.random.PRNGKey(0)
    kx, kp = jax.random.split(key)
    x = jax.random.normal(kx, (batch, nIn, sizeX, sizeX), jnp.float32)
    params = init_params(kp, nIn=nIn, nOut=nOut, nf=nf, nLayer=nLayer, sizeX=sizeX)

    fwd = jax.jit(dc_discriminator_forward)
    out = jax.block_until_ready(fwd(x, params))
    assert out.shape == (batch, nOut, 1, 1), out.shape

    ref = jax.block_until_ready(reference_forward(x, params))
    max_err = float(jnp.max(jnp.abs(out - ref)))
    # bf16 MXU operands / bf16 intermediates vs f32 reference -> loose tolerance.
    assert jnp.allclose(out, ref, rtol=5e-2, atol=5e-2), max_err

    print("KERNEL_OK")
</pallas_src>

<mosaic_0001>
module attributes {stable_mosaic.version = 11 : i64} {
  func.func @_matmul_act_kernel(%arg0: i32, %arg1: i32, %arg2: memref<128x48xbf16, #tpu.memory_space<vmem>>, %arg3: memref<48x128xbf16, #tpu.memory_space<vmem>>, %arg4: memref<128x128xbf16, #tpu.memory_space<vmem>>) attributes {dimension_semantics = [#tpu.dimension_semantics<parallel>, #tpu.dimension_semantics<parallel>], iteration_bounds = array<i64: 1, 1>, scalar_prefetch = 0 : i64, scratch_operands = 0 : i64, tpu.core_type = #tpu.core_type<tc>, window_params = [{transform_indices = @transform_0, window_bounds = array<i64: 128, 48>}, {transform_indices = @transform_1, window_bounds = array<i64: 48, 128>}, {transform_indices = @transform_2, window_bounds = array<i64: 128, 128>}]} {
    %c0 = arith.constant 0 : index
    %c0_0 = arith.constant 0 : index
    %0 = vector.load %arg2[%c0, %c0_0] : memref<128x48xbf16, #tpu.memory_space<vmem>>, vector<128x48xbf16>
    %c0_1 = arith.constant 0 : index
    %c0_2 = arith.constant 0 : index
    %1 = vector.load %arg3[%c0_1, %c0_2] : memref<48x128xbf16, #tpu.memory_space<vmem>>, vector<48x128xbf16>
    %cst = arith.constant dense<0.000000e+00> : vector<128x128xf32>
    %2 = tpu.matmul %0, %1, %cst {dimension_numbers = #tpu.dot_dimension_numbers<[1], [0], [0], [1], [0, 0, 1, 1], [], []>} : vector<128x48xbf16>, vector<48x128xbf16>, vector<128x128xf32> -> vector<128x128xf32>
    %cst_3 = arith.constant 0.000000e+00 : f32
    %3 = vector.broadcast %cst_3 : f32 to vector<128x128xf32>
    %4 = arith.cmpf oge, %2, %3 : vector<128x128xf32>
    %cst_4 = arith.constant 2.000000e-01 : f32
    %5 = vector.broadcast %cst_4 : f32 to vector<128x128xf32>
    %6 = arith.mulf %5, %2 : vector<128x128xf32>
    %7 = arith.select %4, %2, %6 : vector<128x128xi1>, vector<128x128xf32>
    %8 = arith.truncf %7 : vector<128x128xf32> to vector<128x128xbf16>
    %c0_5 = arith.constant 0 : index
    %c0_6 = arith.constant 0 : index
    %9 = vector.load %arg4[%c0_5, %c0_6] : memref<128x128xbf16, #tpu.memory_space<vmem>>, vector<128x128xbf16>
    tpu.vector_store %arg4[%c0_5, %c0_6], %8 {strides = array<i32>} : memref<128x128xbf16, #tpu.memory_space<vmem>>, vector<128x128xbf16>,
    return
  }
  func.func @transform_0(%arg0: i32, %arg1: i32) -> (i32, i32) {
    %c0_i32 = arith.constant 0 : i32
    %c0_i32_0 = arith.constant 0 : i32
    return %arg0, %c0_i32 : i32, i32
  }
  func.func @transform_1(%arg0: i32, %arg1: i32) -> (i32, i32) {
    %c0_i32 = arith.constant 0 : i32
    %c0_i32_0 = arith.constant 0 : i32
    return %c0_i32, %arg1 : i32, i32
  }
  func.func @transform_2(%arg0: i32, %arg1: i32) -> (i32, i32) {
    %c0_i32 = arith.constant 0 : i32
    return %arg0, %arg1 : i32, i32
  }
}

module attributes {stable_mosaic.version = 11 : i64} {
  func.func @_bn_lrelu_kernel(%arg0: i32, %arg1: i32, %arg2: memref<32x128xbf16, #tpu.memory_space<vmem>>, %arg3: memref<1x128xf32, #tpu.memory_space<vmem>>, %arg4: memref<1x128xf32, #tpu.memory_space<vmem>>, %arg5: memref<32x128xbf16, #tpu.memory_space<vmem>>) attributes {dimension_semantics = [#tpu.dimension_semantics<parallel>, #tpu.dimension_semantics<parallel>], iteration_bounds = array<i64: 1, 1>, scalar_prefetch = 0 : i64, scratch_operands = 0 : i64, tpu.core_type = #tpu.core_type<tc>, window_params = [{transform_indices = @transform_0, window_bounds = array<i64: 32, 128>}, {transform_indices = @transform_1, window_bounds = array<i64: 1, 128>}, {transform_indices = @transform_2, window_bounds = array<i64: 1, 128>}, {transform_indices = @transform_3, window_bounds = array<i64: 32, 128>}]} {
    %c0 = arith.constant 0 : index
    %c0_0 = arith.constant 0 : index
    %0 = vector.load %arg2[%c0, %c0_0] : memref<32x128xbf16, #tpu.memory_space<vmem>>, vector<32x128xbf16>
    %1 = arith.extf %0 : vector<32x128xbf16> to vector<32x128xf32>
    %c0_1 = arith.constant 0 : index
    %c0_2 = arith.constant 0 : index
    %2 = vector.load %arg3[%c0_1, %c0_2] : memref<1x128xf32, #tpu.memory_space<vmem>>, vector<1x128xf32>
    %3 = vector.broadcast %2 : vector<1x128xf32> to vector<32x128xf32>
    %4 = arith.mulf %1, %3 : vector<32x128xf32>
    %c0_3 = arith.constant 0 : index
    %c0_4 = arith.constant 0 : index
    %5 = vector.load %arg4[%c0_3, %c0_4] : memref<1x128xf32, #tpu.memory_space<vmem>>, vector<1x128xf32>
    %6 = vector.broadcast %5 : vector<1x128xf32> to vector<32x128xf32>
    %7 = arith.addf %4, %6 : vector<32x128xf32>
    %cst = arith.constant 0.000000e+00 : f32
    %8 = vector.broadcast %cst : f32 to vector<32x128xf32>
    %9 = arith.cmpf oge, %7, %8 : vector<32x128xf32>
    %cst_5 = arith.constant 2.000000e-01 : f32
    %10 = vector.broadcast %cst_5 : f32 to vector<32x128xf32>
    %11 = arith.mulf %10, %7 : vector<32x128xf32>
    %12 = arith.select %9, %7, %11 : vector<32x128xi1>, vector<32x128xf32>
    %13 = arith.truncf %12 : vector<32x128xf32> to vector<32x128xbf16>
    %c0_6 = arith.constant 0 : index
    %c0_7 = arith.constant 0 : index
    %14 = vector.load %arg5[%c0_6, %c0_7] : memref<32x128xbf16, #tpu.memory_space<vmem>>, vector<32x128xbf16>
    tpu.vector_store %arg5[%c0_6, %c0_7], %13 {strides = array<i32>} : memref<32x128xbf16, #tpu.memory_space<vmem>>, vector<32x128xbf16>,
    return
  }
  func.func @transform_0(%arg0: i32, %arg1: i32) -> (i32, i32) {
    %c0_i32 = arith.constant 0 : i32
    return %arg0, %arg1 : i32, i32
  }
  func.func @transform_1(%arg0: i32, %arg1: i32) -> (i32, i32) {
    %c0_i32 = arith.constant 0 : i32
    %c0_i32_0 = arith.constant 0 : i32
    return %c0_i32, %arg1 : i32, i32
  }
  func.func @transform_2(%arg0: i32, %arg1: i32) -> (i32, i32) {
    %c0_i32 = arith.constant 0 : i32
    %c0_i32_0 = arith.constant 0 : i32
    return %c0_i32, %arg1 : i32, i32
  }
  func.func @transform_3(%arg0: i32, %arg1: i32) -> (i32, i32) {
    %c0_i32 = arith.constant 0 : i32
    return %arg0, %arg1 : i32, i32
  }
}

module attributes {stable_mosaic.version = 11 : i64} {
  func.func @_matmul_stats_kernel(%arg0: i32, %arg1: i32, %arg2: memref<32x128xbf16, #tpu.memory_space<vmem>>, %arg3: memref<128x128xbf16, #tpu.memory_space<vmem>>, %arg4: memref<32x128xbf16, #tpu.memory_space<vmem>>, %arg5: memref<8x128xf32, #tpu.memory_space<vmem>>) attributes {dimension_semantics = [#tpu.dimension_semantics<parallel>, #tpu.dimension_semantics<parallel>], iteration_bounds = array<i64: 1, 1>, scalar_prefetch = 0 : i64, scratch_operands = 0 : i64, tpu.core_type = #tpu.core_type<tc>, window_params = [{transform_indices = @transform_0, window_bounds = array<i64: 32, 128>}, {transform_indices = @transform_1, window_bounds = array<i64: 128, 128>}, {transform_indices = @transform_2, window_bounds = array<i64: 32, 128>}, {transform_indices = @transform_3, window_bounds = array<i64: 8, 128>}]} {
    %c0 = arith.constant 0 : index
    %c0_0 = arith.constant 0 : index
    %0 = vector.load %arg2[%c0, %c0_0] : memref<32x128xbf16, #tpu.memory_space<vmem>>, vector<32x128xbf16>
    %c0_1 = arith.constant 0 : index
    %c0_2 = arith.constant 0 : index
    %1 = vector.load %arg3[%c0_1, %c0_2] : memref<128x128xbf16, #tpu.memory_space<vmem>>, vector<128x128xbf16>
    %cst = arith.constant dense<0.000000e+00> : vector<32x128xf32>
    %2 = tpu.matmul %0, %1, %cst {dimension_numbers = #tpu.dot_dimension_numbers<[1], [0], [0], [1], [0, 0, 1, 1], [], []>} : vector<32x128xbf16>, vector<128x128xbf16>, vector<32x128xf32> -> vector<32x128xf32>
    %3 = arith.truncf %2 : vector<32x128xf32> to vector<32x128xbf16>
    %c0_3 = arith.constant 0 : index
    %c0_4 = arith.constant 0 : index
    %4 = vector.load %arg4[%c0_3, %c0_4] : memref<32x128xbf16, #tpu.memory_space<vmem>>, vector<32x128xbf16>
    tpu.vector_store %arg4[%c0_3, %c0_4], %3 {strides = array<i32>} : memref<32x128xbf16, #tpu.memory_space<vmem>>, vector<32x128xbf16>,
    %cst_5 = arith.constant dense<0.000000e+00> : vector<128xf32>
    %5 = vector.multi_reduction <add>, %2, %cst_5 [0] : vector<32x128xf32> to vector<128xf32>
    %6 = vector.shape_cast %5 : vector<128xf32> to vector<1x128xf32>
    %7 = arith.mulf %2, %2 : vector<32x128xf32>
    %cst_6 = arith.constant dense<0.000000e+00> : vector<128xf32>
    %8 = vector.multi_reduction <add>, %7, %cst_6 [0] : vector<32x128xf32> to vector<128xf32>
    %9 = vector.shape_cast %8 : vector<128xf32> to vector<1x128xf32>
    %10 = tpu.iota {dimensions = array<i32: 0>} : vector<8x128xi32>
    %c0_i32 = arith.constant 0 : i32
    %11 = vector.broadcast %c0_i32 : i32 to vector<8x128xi32>
    %12 = arith.cmpi eq, %10, %11 : vector<8x128xi32>
    %13 = vector.shape_cast %6 : vector<1x128xf32> to vector<1x128xf32>
    %14 = vector.broadcast %13 : vector<1x128xf32> to vector<8x128xf32>
    %c1_i32 = arith.constant 1 : i32
    %15 = vector.broadcast %c1_i32 : i32 to vector<8x128xi32>
    %16 = arith.cmpi eq, %10, %15 : vector<8x128xi32>
    %17 = vector.shape_cast %9 : vector<1x128xf32> to vector<1x128xf32>
    %18 = vector.broadcast %17 : vector<1x128xf32> to vector<8x128xf32>
    %cst_7 = arith.constant 0.000000e+00 : f32
    %19 = vector.broadcast %cst_7 : f32 to vector<8x128xf32>
    %20 = arith.select %16, %18, %19 : vector<8x128xi1>, vector<8x128xf32>
    %21 = arith.select %12, %14, %20 : vector<8x128xi1>, vector<8x128xf32>
    %c0_8 = arith.constant 0 : index
    %c0_9 = arith.constant 0 : index
    %22 = vector.load %arg5[%c0_8, %c0_9] : memref<8x128xf32, #tpu.memory_space<vmem>>, vector<8x128xf32>
    tpu.vector_store %arg5[%c0_8, %c0_9], %21 {strides = array<i32>} : memref<8x128xf32, #tpu.memory_space<vmem>>, vector<8x128xf32>,
    return
  }
  func.func @transform_0(%arg0: i32, %arg1: i32) -> (i32, i32) {
    %c0_i32 = arith.constant 0 : i32
    %c0_i32_0 = arith.constant 0 : i32
    return %arg0, %c0_i32 : i32, i32
  }
  func.func @transform_1(%arg0: i32, %arg1: i32) -> (i32, i32) {
    %c0_i32 = arith.constant 0 : i32
    %c0_i32_0 = arith.constant 0 : i32
    return %c0_i32, %arg1 : i32, i32
  }
  func.func @transform_2(%arg0: i32, %arg1: i32) -> (i32, i32) {
    %c0_i32 = arith.constant 0 : i32
    return %arg0, %arg1 : i32, i32
  }
  func.func @transform_3(%arg0: i32, %arg1: i32) -> (i32, i32) {
    %c0_i32 = arith.constant 0 : i32
    return %arg0, %arg1 : i32, i32
  }
}

module attributes {stable_mosaic.version = 11 : i64} {
  func.func @_bn_lrelu_kernel(%arg0: i32, %arg1: i32, %arg2: memref<8x128xbf16, #tpu.memory_space<vmem>>, %arg3: memref<1x128xf32, #tpu.memory_space<vmem>>, %arg4: memref<1x128xf32, #tpu.memory_space<vmem>>, %arg5: memref<8x128xbf16, #tpu.memory_space<vmem>>) attributes {dimension_semantics = [#tpu.dimension_semantics<parallel>, #tpu.dimension_semantics<parallel>], iteration_bounds = array<i64: 1, 1>, scalar_prefetch = 0 : i64, scratch_operands = 0 : i64, tpu.core_type = #tpu.core_type<tc>, window_params = [{transform_indices = @transform_0, window_bounds = array<i64: 8, 128>}, {transform_indices = @transform_1, window_bounds = array<i64: 1, 128>}, {transform_indices = @transform_2, window_bounds = array<i64: 1, 128>}, {transform_indices = @transform_3, window_bounds = array<i64: 8, 128>}]} {
    %c0 = arith.constant 0 : index
    %c0_0 = arith.constant 0 : index
    %0 = vector.load %arg2[%c0, %c0_0] : memref<8x128xbf16, #tpu.memory_space<vmem>>, vector<8x128xbf16>
    %1 = arith.extf %0 : vector<8x128xbf16> to vector<8x128xf32>
    %c0_1 = arith.constant 0 : index
    %c0_2 = arith.constant 0 : index
    %2 = vector.load %arg3[%c0_1, %c0_2] : memref<1x128xf32, #tpu.memory_space<vmem>>, vector<1x128xf32>
    %3 = vector.broadcast %2 : vector<1x128xf32> to vector<8x128xf32>
    %4 = arith.mulf %1, %3 : vector<8x128xf32>
    %c0_3 = arith.constant 0 : index
    %c0_4 = arith.constant 0 : index
    %5 = vector.load %arg4[%c0_3, %c0_4] : memref<1x128xf32, #tpu.memory_space<vmem>>, vector<1x128xf32>
    %6 = vector.broadcast %5 : vector<1x128xf32> to vector<8x128xf32>
    %7 = arith.addf %4, %6 : vector<8x128xf32>
    %cst = arith.constant 0.000000e+00 : f32
    %8 = vector.broadcast %cst : f32 to vector<8x128xf32>
    %9 = arith.cmpf oge, %7, %8 : vector<8x128xf32>
    %cst_5 = arith.constant 2.000000e-01 : f32
    %10 = vector.broadcast %cst_5 : f32 to vector<8x128xf32>
    %11 = arith.mulf %10, %7 : vector<8x128xf32>
    %12 = arith.select %9, %7, %11 : vector<8x128xi1>, vector<8x128xf32>
    %13 = arith.truncf %12 : vector<8x128xf32> to vector<8x128xbf16>
    %c0_6 = arith.constant 0 : index
    %c0_7 = arith.constant 0 : index
    %14 = vector.load %arg5[%c0_6, %c0_7] : memref<8x128xbf16, #tpu.memory_space<vmem>>, vector<8x128xbf16>
    tpu.vector_store %arg5[%c0_6, %c0_7], %13 {strides = array<i32>} : memref<8x128xbf16, #tpu.memory_space<vmem>>, vector<8x128xbf16>,
    return
  }
  func.func @transform_0(%arg0: i32, %arg1: i32) -> (i32, i32) {
    %c0_i32 = arith.constant 0 : i32
    return %arg0, %arg1 : i32, i32
  }
  func.func @transform_1(%arg0: i32, %arg1: i32) -> (i32, i32) {
    %c0_i32 = arith.constant 0 : i32
    %c0_i32_0 = arith.constant 0 : i32
    return %c0_i32, %arg1 : i32, i32
  }
  func.func @transform_2(%arg0: i32, %arg1: i32) -> (i32, i32) {
    %c0_i32 = arith.constant 0 : i32
    %c0_i32_0 = arith.constant 0 : i32
    return %c0_i32, %arg1 : i32, i32
  }
  func.func @transform_3(%arg0: i32, %arg1: i32) -> (i32, i32) {
    %c0_i32 = arith.constant 0 : i32
    return %arg0, %arg1 : i32, i32
  }
}

module attributes {stable_mosaic.version = 11 : i64} {
  func.func @_matmul_stats_kernel(%arg0: i32, %arg1: i32, %arg2: memref<8x256xbf16, #tpu.memory_space<vmem>>, %arg3: memref<256x128xbf16, #tpu.memory_space<vmem>>, %arg4: memref<8x128xbf16, #tpu.memory_space<vmem>>, %arg5: memref<8x128xf32, #tpu.memory_space<vmem>>) attributes {dimension_semantics = [#tpu.dimension_semantics<parallel>, #tpu.dimension_semantics<parallel>], iteration_bounds = array<i64: 1, 1>, scalar_prefetch = 0 : i64, scratch_operands = 0 : i64, tpu.core_type = #tpu.core_type<tc>, window_params = [{transform_indices = @transform_0, window_bounds = array<i64: 8, 256>}, {transform_indices = @transform_1, window_bounds = array<i64: 256, 128>}, {transform_indices = @transform_2, window_bounds = array<i64: 8, 128>}, {transform_indices = @transform_3, window_bounds = array<i64: 8, 128>}]} {
    %c0 = arith.constant 0 : index
    %c0_0 = arith.constant 0 : index
    %0 = vector.load %arg2[%c0, %c0_0] : memref<8x256xbf16, #tpu.memory_space<vmem>>, vector<8x256xbf16>
    %c0_1 = arith.constant 0 : index
    %c0_2 = arith.constant 0 : index
    %1 = vector.load %arg3[%c0_1, %c0_2] : memref<256x128xbf16, #tpu.memory_space<vmem>>, vector<256x128xbf16>
    %cst = arith.constant dense<0.000000e+00> : vector<8x128xf32>
    %2 = tpu.matmul %0, %1, %cst {dimension_numbers = #tpu.dot_dimension_numbers<[1], [0], [0], [1], [0, 0, 1, 1], [], []>} : vector<8x256xbf16>, vector<256x128xbf16>, vector<8x128xf32> -> vector<8x128xf32>
    %3 = arith.truncf %2 : vector<8x128xf32> to vector<8x128xbf16>
    %c0_3 = arith.constant 0 : index
    %c0_4 = arith.constant 0 : index
    %4 = vector.load %arg4[%c0_3, %c0_4] : memref<8x128xbf16, #tpu.memory_space<vmem>>, vector<8x128xbf16>
    tpu.vector_store %arg4[%c0_3, %c0_4], %3 {strides = array<i32>} : memref<8x128xbf16, #tpu.memory_space<vmem>>, vector<8x128xbf16>,
    %cst_5 = arith.constant dense<0.000000e+00> : vector<128xf32>
    %5 = vector.multi_reduction <add>, %2, %cst_5 [0] : vector<8x128xf32> to vector<128xf32>
    %6 = vector.shape_cast %5 : vector<128xf32> to vector<1x128xf32>
    %7 = arith.mulf %2, %2 : vector<8x128xf32>
    %cst_6 = arith.constant dense<0.000000e+00> : vector<128xf32>
    %8 = vector.multi_reduction <add>, %7, %cst_6 [0] : vector<8x128xf32> to vector<128xf32>
    %9 = vector.shape_cast %8 : vector<128xf32> to vector<1x128xf32>
    %10 = tpu.iota {dimensions = array<i32: 0>} : vector<8x128xi32>
    %c0_i32 = arith.constant 0 : i32
    %11 = vector.broadcast %c0_i32 : i32 to vector<8x128xi32>
    %12 = arith.cmpi eq, %10, %11 : vector<8x128xi32>
    %13 = vector.shape_cast %6 : vector<1x128xf32> to vector<1x128xf32>
    %14 = vector.broadcast %13 : vector<1x128xf32> to vector<8x128xf32>
    %c1_i32 = arith.constant 1 : i32
    %15 = vector.broadcast %c1_i32 : i32 to vector<8x128xi32>
    %16 = arith.cmpi eq, %10, %15 : vector<8x128xi32>
    %17 = vector.shape_cast %9 : vector<1x128xf32> to vector<1x128xf32>
    %18 = vector.broadcast %17 : vector<1x128xf32> to vector<8x128xf32>
    %cst_7 = arith.constant 0.000000e+00 : f32
    %19 = vector.broadcast %cst_7 : f32 to vector<8x128xf32>
    %20 = arith.select %16, %18, %19 : vector<8x128xi1>, vector<8x128xf32>
    %21 = arith.select %12, %14, %20 : vector<8x128xi1>, vector<8x128xf32>
    %c0_8 = arith.constant 0 : index
    %c0_9 = arith.constant 0 : index
    %22 = vector.load %arg5[%c0_8, %c0_9] : memref<8x128xf32, #tpu.memory_space<vmem>>, vector<8x128xf32>
    tpu.vector_store %arg5[%c0_8, %c0_9], %21 {strides = array<i32>} : memref<8x128xf32, #tpu.memory_space<vmem>>, vector<8x128xf32>,
    return
  }
  func.func @transform_0(%arg0: i32, %arg1: i32) -> (i32, i32) {
    %c0_i32 = arith.constant 0 : i32
    %c0_i32_0 = arith.constant 0 : i32
    return %arg0, %c0_i32 : i32, i32
  }
  func.func @transform_1(%arg0: i32, %arg1: i32) -> (i32, i32) {
    %c0_i32 = arith.constant 0 : i32
    %c0_i32_0 = arith.constant 0 : i32
    return %c0_i32, %arg1 : i32, i32
  }
  func.func @transform_2(%arg0: i32, %arg1: i32) -> (i32, i32) {
    %c0_i32 = arith.constant 0 : i32
    return %arg0, %arg1 : i32, i32
  }
  func.func @transform_3(%arg0: i32, %arg1: i32) -> (i32, i32) {
    %c0_i32 = arith.constant 0 : i32
    return %arg0, %arg1 : i32, i32
  }
}

module attributes {stable_mosaic.version = 11 : i64} {
  func.func @_matmul_act_kernel(%arg0: i32, %arg1: i32, %arg2: memref<8x128xbf16, #tpu.memory_space<vmem>>, %arg3: memref<128x128xbf16, #tpu.memory_space<vmem>>, %arg4: memref<8x128xf32, #tpu.memory_space<vmem>>) attributes {dimension_semantics = [#tpu.dimension_semantics<parallel>, #tpu.dimension_semantics<parallel>], iteration_bounds = array<i64: 1, 1>, scalar_prefetch = 0 : i64, scratch_operands = 0 : i64, tpu.core_type = #tpu.core_type<tc>, window_params = [{transform_indices = @transform_0, window_bounds = array<i64: 8, 128>}, {transform_indices = @transform_1, window_bounds = array<i64: 128, 128>}, {transform_indices = @transform_2, window_bounds = array<i64: 8, 128>}]} {
    %c0 = arith.constant 0 : index
    %c0_0 = arith.constant 0 : index
    %0 = vector.load %arg2[%c0, %c0_0] : memref<8x128xbf16, #tpu.memory_space<vmem>>, vector<8x128xbf16>
    %c0_1 = arith.constant 0 : index
    %c0_2 = arith.constant 0 : index
    %1 = vector.load %arg3[%c0_1, %c0_2] : memref<128x128xbf16, #tpu.memory_space<vmem>>, vector<128x128xbf16>
    %cst = arith.constant dense<0.000000e+00> : vector<8x128xf32>
    %2 = tpu.matmul %0, %1, %cst {dimension_numbers = #tpu.dot_dimension_numbers<[1], [0], [0], [1], [0, 0, 1, 1], [], []>} : vector<8x128xbf16>, vector<128x128xbf16>, vector<8x128xf32> -> vector<8x128xf32>
    %c0_3 = arith.constant 0 : index
    %c0_4 = arith.constant 0 : index
    %3 = vector.load %arg4[%c0_3, %c0_4] : memref<8x128xf32, #tpu.memory_space<vmem>>, vector<8x128xf32>
    tpu.vector_store %arg4[%c0_3, %c0_4], %2 {strides = array<i32>} : memref<8x128xf32, #tpu.memory_space<vmem>>, vector<8x128xf32>,
    return
  }
  func.func @transform_0(%arg0: i32, %arg1: i32) -> (i32, i32) {
    %c0_i32 = arith.constant 0 : i32
    %c0_i32_0 = arith.constant 0 : i32
    return %arg0, %c0_i32 : i32, i32
  }
  func.func @transform_1(%arg0: i32, %arg1: i32) -> (i32, i32) {
    %c0_i32 = arith.constant 0 : i32
    %c0_i32_0 = arith.constant 0 : i32
    return %c0_i32, %arg1 : i32, i32
  }
  func.func @transform_2(%arg0: i32, %arg1: i32) -> (i32, i32) {
    %c0_i32 = arith.constant 0 : i32
    return %arg0, %arg1 : i32, i32
  }
}

</mosaic_0001>

<llo_original>
// kernel: dc_discriminator_forward.6
$region0: #{dc_discriminator_forward.6}
  #allocation0 [shape = 'u32[]', space=smem, size = 0x4, offset = 0x4, fixed_abs, tag = 'smem constant byte address 0x4 - core index']
  #allocation1 [shape = 'u32[144,128]{1,0:T(1,128)}', space=vmem, size = 0x12000, scoped, tag = 'internal scratch']
  %s0 = inlined_call_operand.hbm [shape: bf16[128,48], index: 0, kind: input, shape index: {}]
  %s1 = inlined_call_operand.hbm [shape: bf16[48,128], index: 1, kind: input, shape index: {}]
  %s2 = inlined_call_operand.hbm [shape: bf16[128,128], index: 2, kind: output, shape index: {}]
  %s3 = sld [smem:[#allocation0]]
  $region26: #{dc_discriminator_forward.6} parent=0
    _
  %s5 = ssub.s32 1, %s3
  %s6 = scalar_select 0, %s5, %s3
  $region1: #{dc_discriminator_forward.6} parent=0
    #allocation2 [shape = 'u8[32768]{0}', space=vmem, size = 0x8000, scoped, tag = 'input window, operand 0, single buffered']
    #allocation3 [shape = 's32[1]{0}', space=sflag, size = 0x4, scoped, tag = 'scoped memory for dc_discriminator_forward.6']
    #allocation4 [shape = 's32[1]{0}', space=sflag, size = 0x4, scoped, tag = 'scoped memory for dc_discriminator_forward.6']
    #allocation5 [shape = 'u8[12288]{0}', space=vmem, size = 0x3000, scoped, tag = 'input window, operand 1, single buffered']
    #allocation6 [shape = 's32[1]{0}', space=sflag, size = 0x4, scoped, tag = 'scoped memory for dc_discriminator_forward.6']
    #allocation7 [shape = 'u8[32768]{0}', space=vmem, size = 0x8000, scoped, tag = 'output window, operand 0, single buffered']
    %7 = vsyncpa [#allocation3], 0
    %8 = vsyncpa [#allocation6], 0
    %9 = vsyncpa [#allocation4], 0
    // Predicated region
    $region2: #{dc_discriminator_forward.6} parent=1 // pred_check
      _
    $region3: #{dc_discriminator_forward.6} parent=1 // pred_check_branch
      %11 = sbr.rel (0) target = $region5
    $region4: #{dc_discriminator_forward.6} parent=1 // pred_region
      %s13 = ssub.s32 1024, 1024
      %14 = vsyncadd [#allocation3], %s13
      %s15 = sshll.u32 [#allocation2], 4
      %s16 = int_to_ptr.vmem [resolvable:$true] %s15
      %21 = dma.hbm_to_vmem [thread:$0]  %s0, 1024, %s16, [#allocation3], 64, 64, 4
    $region5: #{dc_discriminator_forward.6} parent=1 // pred_fallthru
      _
    // Predicated region
    $region6: #{dc_discriminator_forward.6} parent=1 // pred_check
      _
    $region7: #{dc_discriminator_forward.6} parent=1 // pred_check_branch
      %23 = sbr.rel (0) target = $region9
    $region8: #{dc_discriminator_forward.6} parent=1 // pred_region
      %s25 = ssub.s32 384, 384
      %26 = vsyncadd [#allocation6], %s25
      %s27 = sshll.u32 [#allocation5], 4
      %s28 = int_to_ptr.vmem [resolvable:$true] %s27
      %33 = dma.hbm_to_vmem [thread:$0]  %s1, 384, %s28, [#allocation6], 64, 64, 4
    $region9: #{dc_discriminator_forward.6} parent=1 // pred_fallthru
      _
    // Predicated region
    $region10: #{dc_discriminator_forward.6} parent=1 // pred_check
      _
    $region11: #{dc_discriminator_forward.6} parent=1 // pred_check_branch
      %35 = sbr.rel (0) target = $region13
    $region12: #{dc_discriminator_forward.6} parent=1 // pred_region
      %36 = dma.done [#allocation3], 1024
    $region13: #{dc_discriminator_forward.6} parent=1 // pred_fallthru
      _
    // Predicated region
    $region14: #{dc_discriminator_forward.6} parent=1 // pred_check
      _
    $region15: #{dc_discriminator_forward.6} parent=1 // pred_check_branch
      %38 = sbr.rel (0) target = $region17
    $region16: #{dc_discriminator_forward.6} parent=1 // pred_region
      %39 = dma.done [#allocation6], 384
    $region17: #{dc_discriminator_forward.6} parent=1 // pred_fallthru
      _
    %v41 = vld [vmem:[#allocation2] sm:$0xf]
    %v42 = vld [vmem:[#allocation2 + $0x4] sm:$0xf]
    %v43 = vld [vmem:[#allocation2 + $0x8] sm:$0xf]
    %v44 = vld [vmem:[#allocation2 + $0xc] sm:$0xf]
    %v45 = vld [vmem:[#allocation2 + $0x10] sm:$0xf]
    %v46 = vld [vmem:[#allocation2 + $0x14] sm:$0xf]
    %v47 = vld [vmem:[#allocation2 + $0x18] sm:$0xf]
    %v48 = vld [vmem:[#allocation2 + $0x1c] sm:$0xf]
    %v49 = vld [vmem:[#allocation2 + $0x20] sm:$0xf]
    %v50 = vld [vmem:[#allocation2 + $0x24] sm:$0xf]
    %v51 = vld [vmem:[#allocation2 + $0x28] sm:$0xf]
    %v52 = vld [vmem:[#allocation2 + $0x2c] sm:$0xf]
    %v53 = vld [vmem:[#allocation2 + $0x30] sm:$0xf]
    %v54 = vld [vmem:[#allocation2 + $0x34] sm:$0xf]
    %v55 = vld [vmem:[#allocation2 + $0x38] sm:$0xf]
    %v56 = vld [vmem:[#allocation2 + $0x3c] sm:$0xf]
    %v57 = vld [vmem:[#allocation5] sm:$0xf]
    %v58 = vld [vmem:[#allocation5 + $0x4] sm:$0xf]
    %v59 = vld [vmem:[#allocation5 + $0x8] sm:$0xf]
    %v60 = vld [vmem:[#allocation5 + $0xc] sm:$0xf]
    %v61 = vld [vmem:[#allocation5 + $0x10] sm:$0xf]
    %v62 = vld [vmem:[#allocation5 + $0x14] sm:$0xf]
    %v79 = vunpack.c.l.b16 %v41
    %v80 = vunpack.c.l.b16 %v42
    %v81 = vunpack.c.l.b16 %v43
    %v82 = vunpack.c.l.b16 %v44
    %v83 = vunpack.c.l.b16 %v45
    %v84 = vunpack.c.l.b16 %v46
    %v85 = vunpack.c.l.b16 %v47
    %v86 = vunpack.c.l.b16 %v48
    %v87 = vunpack.c.l.b16 %v49
    %v88 = vunpack.c.l.b16 %v50
    %v89 = vunpack.c.l.b16 %v51
    %v90 = vunpack.c.l.b16 %v52
    %v91 = vunpack.c.l.b16 %v53
    %v92 = vunpack.c.l.b16 %v54
    %v93 = vunpack.c.l.b16 %v55
    %v94 = vunpack.c.l.b16 %v56
    %v95 = vpack.c.b16 %v80, %v79
    %v96 = vpack.c.b16 %v82, %v81
    %v97 = vpack.c.b16 %v84, %v83
    %v98 = vpack.c.b16 %v86, %v85
    %v99 = vpack.c.b16 %v88, %v87
    %v100 = vpack.c.b16 %v90, %v89
    %v101 = vpack.c.b16 %v92, %v91
    %v102 = vpack.c.b16 %v94, %v93
    %v109 = vunpack.c.l.b16 %v57
    %v110 = vunpack.c.l.b16 %v58
    %v111 = vunpack.c.l.b16 %v59
    %v112 = vunpack.c.l.b16 %v60
    %v113 = vunpack.c.l.b16 %v61
    %v114 = vunpack.c.l.b16 %v62
    %v115 = vpack.c.b16 %v110, %v109
    %v116 = vpack.c.b16 %v112, %v111
    %v117 = vpack.c.b16 %v114, %v113
    %vm121 = vcmask 392192
    %v123 = vsel %vm121, %v95, 0
    %v126 = vsel %vm121, %v96, 0
    %v129 = vsel %vm121, %v97, 0
    %v132 = vsel %vm121, %v98, 0
    %v135 = vsel %vm121, %v99, 0
    %v138 = vsel %vm121, %v100, 0
    %v141 = vsel %vm121, %v101, 0
    %v144 = vsel %vm121, %v102, 0
    %146 = vmatprep.subr.bf16.mxu0 0
    %147 = vmatpush1.bf16.msra.mxu0 %v115
    %148 = vmatprep.subr.bf16.mxu0 0
    %149 = vmatpush1.bf16.msra.mxu0 %v116
    %150 = vmatprep.subr.bf16.mxu0 0
    %151 = vmatpush1.bf16.msra.mxu0 %v117
    %152 = vmatprep.subr.bf16.mxu0 0
    %153 = vmatpush1.bf16.msra.mxu0 0
    %154 = vmatprep.subr.bf16.mxu0 0
    %155 = vmatpush1.bf16.msra.mxu0 0
    %156 = vmatprep.subr.bf16.mxu0 0
    %157 = vmatpush1.bf16.msra.mxu0 0
    %158 = vmatprep.subr.bf16.mxu0 0
    %159 = vmatpush1.bf16.msra.mxu0 0
    %160 = vmatprep.subr.bf16.mxu0 0
    %161 = vmatpush1.bf16.msra.mxu0 0
    %162 = vmatprep.subr.bf16.mxu0 0
    %163 = vmatpush1.bf16.msra.mxu0 0
    %164 = vmatprep.subr.bf16.mxu0 0
    %165 = vmatpush1.bf16.msra.mxu0 0
    %166 = vmatprep.subr.bf16.mxu0 0
    %167 = vmatpush1.bf16.msra.mxu0 0
    %168 = vmatprep.subr.bf16.mxu0 0
    %169 = vmatpush1.bf16.msra.mxu0 0
    %170 = vmatprep.subr.bf16.mxu0 0
    %171 = vmatpush1.bf16.msra.mxu0 0
    %172 = vmatprep.subr.bf16.mxu0 0
    %173 = vmatpush1.bf16.msra.mxu0 0
    %174 = vmatprep.subr.bf16.mxu0 0
    %175 = vmatpush1.bf16.msra.mxu0 0
    %176 = vmatprep.subr.bf16.mxu0 0
    %177 = vmatpush1.bf16.msra.mxu0 0
    %178 = vmatprep.mubr.bf16.mxu0 0
    %179 = vmatmul.mubr.bf16.gmra.mrb[0].mxu0 %v123
    %v180 = vpop.f32.mrb[0].mxu0
    %v181 = vadd.f32 0.0, %v180
    %v182 = vpop.f32.mrb[0].mxu0
    %v183 = vpop.f32.mrb[0].mxu0
    %v184 = vadd.f32 0.0, %v183
    %v185 = vpop.f32.mrb[0].mxu0
    %186 = vmatprep.mubr.bf16.mxu0 0
    %187 = vmatmul.mubr.bf16.gmra.mrb[0].mxu0 %v126
    %v188 = vpop.f32.mrb[0].mxu0
    %v189 = vadd.f32 0.0, %v188
    %v190 = vpop.f32.mrb[0].mxu0
    %v191 = vpop.f32.mrb[0].mxu0
    %v192 = vadd.f32 0.0, %v191
    %v193 = vpop.f32.mrb[0].mxu0
    %194 = vmatprep.mubr.bf16.mxu0 0
    %195 = vmatmul.mubr.bf16.gmra.mrb[0].mxu0 %v129
    %v196 = vpop.f32.mrb[0].mxu0
    %v197 = vadd.f32 0.0, %v196
    %v198 = vpop.f32.mrb[0].mxu0
    %v199 = vpop.f32.mrb[0].mxu0
    %v200 = vadd.f32 0.0, %v199
    %v201 = vpop.f32.mrb[0].mxu0
    %202 = vmatprep.mubr.bf16.mxu0 0
    %203 = vmatmul.mubr.bf16.gmra.mrb[0].mxu0 %v132
    %v204 = vpop.f32.mrb[0].mxu0
    %v205 = vadd.f32 0.0, %v204
    %v206 = vpop.f32.mrb[0].mxu0
    %v207 = vpop.f32.mrb[0].mxu0
    %v208 = vadd.f32 0.0, %v207
    %v209 = vpop.f32.mrb[0].mxu0
    %210 = vmatprep.mubr.bf16.mxu0 0
    %211 = vmatmul.mubr.bf16.gmra.mrb[0].mxu0 %v135
    %v212 = vpop.f32.mrb[0].mxu0
    %v213 = vadd.f32 0.0, %v212
    %v214 = vpop.f32.mrb[0].mxu0
    %v215 = vpop.f32.mrb[0].mxu0
    %v216 = vadd.f32 0.0, %v215
    %v217 = vpop.f32.mrb[0].mxu0
    %218 = vmatprep.mubr.bf16.mxu0 0
    %219 = vmatmul.mubr.bf16.gmra.mrb[0].mxu0 %v138
    %v220 = vpop.f32.mrb[0].mxu0
    %v221 = vadd.f32 0.0, %v220
    %v222 = vpop.f32.mrb[0].mxu0
    %v223 = vpop.f32.mrb[0].mxu0
    %v224 = vadd.f32 0.0, %v223
    %v225 = vpop.f32.mrb[0].mxu0
    %226 = vmatprep.mubr.bf16.mxu0 0
    %227 = vmatmul.mubr.bf16.gmra.mrb[0].mxu0 %v141
    %v228 = vpop.f32.mrb[0].mxu0
    %v229 = vadd.f32 0.0, %v228
    %v230 = vpop.f32.mrb[0].mxu0
    %v231 = vpop.f32.mrb[0].mxu0
    %v232 = vadd.f32 0.0, %v231
    %v233 = vpop.f32.mrb[0].mxu0
    %234 = vmatprep.mubr.bf16.mxu0 0
    %235 = vmatmul.mubr.bf16.gmra.mrb[0].mxu0 %v144
    %v236 = vpop.f32.mrb[0].mxu0
    %v237 = vadd.f32 0.0, %v236
    %v238 = vpop.f32.mrb[0].mxu0
    %v239 = vpop.f32.mrb[0].mxu0
    %v240 = vadd.f32 0.0, %v239
    %v241 = vpop.f32.mrb[0].mxu0
    %242 = vdwg.mxu0
    %vm243 = vcmp.ge.f32.partialorder %v181, 0.0
    %vm244 = vcmp.ge.f32.partialorder %v184, 0.0
    %vm245 = vcmp.ge.f32.partialorder %v189, 0.0
    %vm246 = vcmp.ge.f32.partialorder %v192, 0.0
    %vm247 = vcmp.ge.f32.partialorder %v197, 0.0
    %vm248 = vcmp.ge.f32.partialorder %v200, 0.0
    %vm249 = vcmp.ge.f32.partialorder %v205, 0.0
    %vm250 = vcmp.ge.f32.partialorder %v208, 0.0
    %vm251 = vcmp.ge.f32.partialorder %v213, 0.0
    %vm252 = vcmp.ge.f32.partialorder %v216, 0.0
    %vm253 = vcmp.ge.f32.partialorder %v221, 0.0
    %vm254 = vcmp.ge.f32.partialorder %v224, 0.0
    %vm255 = vcmp.ge.f32.partialorder %v229, 0.0
    %vm256 = vcmp.ge.f32.partialorder %v232, 0.0
    %vm257 = vcmp.ge.f32.partialorder %v237, 0.0
    %vm258 = vcmp.ge.f32.partialorder %v240, 0.0
    %v259 = vmul.f32 %v181, 0.2
    %v260 = vmul.f32 %v184, 0.2
    %v261 = vmul.f32 %v189, 0.2
    %v262 = vmul.f32 %v192, 0.2
    %v263 = vmul.f32 %v197, 0.2
    %v264 = vmul.f32 %v200, 0.2
    %v265 = vmul.f32 %v205, 0.2
    %v266 = vmul.f32 %v208, 0.2
    %v267 = vmul.f32 %v213, 0.2
    %v268 = vmul.f32 %v216, 0.2
    %v269 = vmul.f32 %v221, 0.2
    %v270 = vmul.f32 %v224, 0.2
    %v271 = vmul.f32 %v229, 0.2
    %v272 = vmul.f32 %v232, 0.2
    %v273 = vmul.f32 %v237, 0.2
    %v274 = vmul.f32 %v240, 0.2
    %v275 = vsel %vm243, %v181, %v259
    %v276 = vsel %vm244, %v184, %v260
    %v277 = vsel %vm245, %v189, %v261
    %v278 = vsel %vm246, %v192, %v262
    %v279 = vsel %vm247, %v197, %v263
    %v280 = vsel %vm248, %v200, %v264
    %v281 = vsel %vm249, %v205, %v265
    %v282 = vsel %vm250, %v208, %v266
    %v283 = vsel %vm251, %v213, %v267
    %v284 = vsel %vm252, %v216, %v268
    %v285 = vsel %vm253, %v221, %v269
    %v286 = vsel %vm254, %v224, %v270
    %v287 = vsel %vm255, %v229, %v271
    %v288 = vsel %vm256, %v232, %v272
    %v289 = vsel %vm257, %v237, %v273
    %v290 = vsel %vm258, %v240, %v274
    %v291 = vpack.c.bf16 %v276, %v275
    %v292 = vpack.c.bf16 %v278, %v277
    %v293 = vpack.c.bf16 %v280, %v279
    %v294 = vpack.c.bf16 %v282, %v281
    %v295 = vpack.c.bf16 %v284, %v283
    %v296 = vpack.c.bf16 %v286, %v285
    %v297 = vpack.c.bf16 %v288, %v287
    %v298 = vpack.c.bf16 %v290, %v289
    %v307 = vunpack.c.l.b16 %v291
    %v308 = vunpack.c.h.b16 %v291
    %v309 = vunpack.c.l.b16 %v292
    %v310 = vunpack.c.h.b16 %v292
    %v311 = vunpack.c.l.b16 %v293
    %v312 = vunpack.c.h.b16 %v293
    %v313 = vunpack.c.l.b16 %v294
    %v314 = vunpack.c.h.b16 %v294
    %v315 = vunpack.c.l.b16 %v295
    %v316 = vunpack.c.h.b16 %v295
    %v317 = vunpack.c.l.b16 %v296
    %v318 = vunpack.c.h.b16 %v296
    %v319 = vunpack.c.l.b16 %v297
    %v320 = vunpack.c.h.b16 %v297
    %v321 = vunpack.c.l.b16 %v298
    %v322 = vunpack.c.h.b16 %v298
    %v323 = vpack.c.b16 %v307, %v307
    %v324 = vpack.c.b16 %v308, %v308
    %v325 = vpack.c.b16 %v309, %v309
    %v326 = vpack.c.b16 %v310, %v310
    %v327 = vpack.c.b16 %v311, %v311
    %v328 = vpack.c.b16 %v312, %v312
    %v329 = vpack.c.b16 %v313, %v313
    %v330 = vpack.c.b16 %v314, %v314
    %v331 = vpack.c.b16 %v315, %v315
    %v332 = vpack.c.b16 %v316, %v316
    %v333 = vpack.c.b16 %v317, %v317
    %v334 = vpack.c.b16 %v318, %v318
    %v335 = vpack.c.b16 %v319, %v319
    %v336 = vpack.c.b16 %v320, %v320
    %v337 = vpack.c.b16 %v321, %v321
    %v338 = vpack.c.b16 %v322, %v322
    %355 = vst [vmem:[#allocation7] sm:$0xf] %v323
    %356 = vst [vmem:[#allocation7 + $0x4] sm:$0xf] %v324
    %357 = vst [vmem:[#allocation7 + $0x8] sm:$0xf] %v325
    %358 = vst [vmem:[#allocation7 + $0xc] sm:$0xf] %v326
    %359 = vst [vmem:[#allocation7 + $0x10] sm:$0xf] %v327
    %360 = vst [vmem:[#allocation7 + $0x14] sm:$0xf] %v328
    %361 = vst [vmem:[#allocation7 + $0x18] sm:$0xf] %v329
    %362 = vst [vmem:[#allocation7 + $0x1c] sm:$0xf] %v330
    %363 = vst [vmem:[#allocation7 + $0x20] sm:$0xf] %v331
    %364 = vst [vmem:[#allocation7 + $0x24] sm:$0xf] %v332
    %365 = vst [vmem:[#allocation7 + $0x28] sm:$0xf] %v333
    %366 = vst [vmem:[#allocation7 + $0x2c] sm:$0xf] %v334
    %367 = vst [vmem:[#allocation7 + $0x30] sm:$0xf] %v335
    %368 = vst [vmem:[#allocation7 + $0x34] sm:$0xf] %v336
    %369 = vst [vmem:[#allocation7 + $0x38] sm:$0xf] %v337
    %370 = vst [vmem:[#allocation7 + $0x3c] sm:$0xf] %v338
    // Predicated region
    $region18: #{dc_discriminator_forward.6} parent=1 // pred_check
      _
    $region19: #{dc_discriminator_forward.6} parent=1 // pred_check_branch
      %372 = sbr.rel (0) target = $region21
    $region20: #{dc_discriminator_forward.6} parent=1 // pred_region
      %s374 = ssub.s32 1024, 1024
      %375 = vsyncadd [#allocation4], %s374
      %s376 = sshll.u32 [#allocation7], 4
      %s377 = int_to_ptr.vmem [resolvable:$true] %s376
      %382 = dma.vmem_to_hbm [thread:$0]  %s377, 1024, %s2, [#allocation4], 64, 64, 4
    $region21: #{dc_discriminator_forward.6} parent=1 // pred_fallthru
      _
    // Predicated region
    $region22: #{dc_discriminator_forward.6} parent=1 // pred_check
      _
    $region23: #{dc_discriminator_forward.6} parent=1 // pred_check_branch
      %384 = sbr.rel (0) target = $region25
    $region24: #{dc_discriminator_forward.6} parent=1 // pred_region
      %385 = dma.done [#allocation4], 1024
    $region25: #{dc_discriminator_forward.6} parent=1 // pred_fallthru
      _
    %386 = vsyncpa [#allocation3], 1
    %387 = vsyncpa [#allocation6], 1
    %388 = vsyncpa [#allocation4], 1

// kernel: dc_discriminator_forward.8
$region0: #{dc_discriminator_forward.8}
  #allocation0 [shape = 'u32[]', space=smem, size = 0x4, offset = 0x4, fixed_abs, tag = 'smem constant byte address 0x4 - core index']
  #allocation1 [shape = 'u32[144,128]{1,0:T(1,128)}', space=vmem, size = 0x12000, scoped, tag = 'internal scratch']
  %s0 = inlined_call_operand.hbm [shape: bf16[32,128], index: 0, kind: input, shape index: {}]
  %s1 = inlined_call_operand.hbm [shape: f32[1,128], index: 1, kind: input, shape index: {}]
  %s2 = inlined_call_operand.hbm [shape: f32[1,128], index: 2, kind: input, shape index: {}]
  %s3 = inlined_call_operand.hbm [shape: bf16[32,128], index: 3, kind: output, shape index: {}]
  %s4 = sld [smem:[#allocation0]]
  $region34: #{dc_discriminator_forward.8} parent=0
    _
  %s6 = ssub.s32 1, %s4
  %s7 = scalar_select 0, %s6, %s4
  $region1: #{dc_discriminator_forward.8} parent=0
    #allocation2 [shape = 'u8[8192]{0}', space=vmem, size = 0x2000, scoped, tag = 'input window, operand 0, single buffered']
    #allocation3 [shape = 's32[1]{0}', space=sflag, size = 0x4, scoped, tag = 'scoped memory for dc_discriminator_forward.8']
    #allocation4 [shape = 's32[1]{0}', space=sflag, size = 0x4, scoped, tag = 'scoped memory for dc_discriminator_forward.8']
    #allocation5 [shape = 'u8[512]{0}', space=vmem, size = 0x400, scoped, tag = 'input window, operand 1, single buffered']
    #allocation6 [shape = 's32[1]{0}', space=sflag, size = 0x4, scoped, tag = 'scoped memory for dc_discriminator_forward.8']
    #allocation7 [shape = 'u8[512]{0}', space=vmem, size = 0x400, scoped, tag = 'input window, operand 2, single buffered']
    #allocation8 [shape = 'u8[8192]{0}', space=vmem, size = 0x2000, scoped, tag = 'output window, operand 0, single buffered']
    %8 = vsyncpa [#allocation3], 0
    %9 = vsyncpa [#allocation6], 0
    %10 = vsyncpa [#allocation4], 0
    // Predicated region
    $region2: #{dc_discriminator_forward.8} parent=1 // pred_check
      _
    $region3: #{dc_discriminator_forward.8} parent=1 // pred_check_branch
      %12 = sbr.rel (0) target = $region5
    $region4: #{dc_discriminator_forward.8} parent=1 // pred_region
      %s14 = ssub.s32 256, 256
      %15 = vsyncadd [#allocation3], %s14
      %s16 = sshll.u32 [#allocation2], 4
      %s17 = int_to_ptr.vmem [resolvable:$true] %s16
      %22 = dma.hbm_to_vmem [thread:$0]  %s0, 256, %s17, [#allocation3], 64, 64, 4
    $region5: #{dc_discriminator_forward.8} parent=1 // pred_fallthru
      _
    // Predicated region
    $region6: #{dc_discriminator_forward.8} parent=1 // pred_check
      _
    $region7: #{dc_discriminator_forward.8} parent=1 // pred_check_branch
      %24 = sbr.rel (0) target = $region9
    $region8: #{dc_discriminator_forward.8} parent=1 // pred_region
      %s26 = ssub.s32 16, 16
      %27 = vsyncadd [#allocation6], %s26
      %s29 = sshll.u32 [#allocation5], 4
      %s30 = int_to_ptr.vmem [resolvable:$true] %s29
      %32 = dma.hbm_to_vmem [thread:$0]  %s1, 16, %s30, [#allocation6]
    $region9: #{dc_discriminator_forward.8} parent=1 // pred_fallthru
      _
    // Predicated region
    $region10: #{dc_discriminator_forward.8} parent=1 // pred_check
      _
    $region11: #{dc_discriminator_forward.8} parent=1 // pred_check_branch
      %34 = sbr.rel (0) target = $region13
    $region12: #{dc_discriminator_forward.8} parent=1 // pred_region
      %s36 = ssub.s32 16, 16
      %37 = vsyncadd [#allocation6], %s36
      %s39 = sshll.u32 [#allocation7], 4
      %s40 = int_to_ptr.vmem [resolvable:$true] %s39
      %42 = dma.hbm_to_vmem [thread:$0]  %s2, 16, %s40, [#allocation6]
    $region13: #{dc_discriminator_forward.8} parent=1 // pred_fallthru
      _
    // Predicated region
    $region14: #{dc_discriminator_forward.8} parent=1 // pred_check
      _
    $region15: #{dc_discriminator_forward.8} parent=1 // pred_check_branch
      %44 = sbr.rel (0) target = $region17
    $region16: #{dc_discriminator_forward.8} parent=1 // pred_region
      %45 = dma.done [#allocation3], 256
    $region17: #{dc_discriminator_forward.8} parent=1 // pred_fallthru
      _
    // Predicated region
    $region18: #{dc_discriminator_forward.8} parent=1 // pred_check
      _
    $region19: #{dc_discriminator_forward.8} parent=1 // pred_check_branch
      %47 = sbr.rel (0) target = $region21
    $region20: #{dc_discriminator_forward.8} parent=1 // pred_region
      %48 = dma.done [#allocation6], 16
    $region21: #{dc_discriminator_forward.8} parent=1 // pred_fallthru
      _
    // Predicated region
    $region22: #{dc_discriminator_forward.8} parent=1 // pred_check
      _
    $region23: #{dc_discriminator_forward.8} parent=1 // pred_check_branch
      %50 = sbr.rel (0) target = $region25
    $region24: #{dc_discriminator_forward.8} parent=1 // pred_region
      %51 = dma.done [#allocation6], 16
    $region25: #{dc_discriminator_forward.8} parent=1 // pred_fallthru
      _
    %v52 = vld [vmem:[#allocation2] sm:$0xf]
    %v53 = vld [vmem:[#allocation2 + $0x4] sm:$0xf]
    %v54 = vld [vmem:[#allocation2 + $0x8] sm:$0xf]
    %v55 = vld [vmem:[#allocation2 + $0xc] sm:$0xf]
    %v56 = vunpack.c.l.bf16 %v52
    %v57 = vunpack.c.l.bf16 %v53
    %v58 = vunpack.c.l.bf16 %v54
    %v59 = vunpack.c.l.bf16 %v55
    %v60 = vld [vmem:[#allocation5] sm:$0x1]
    %v62 = vlaneseq
    %v63 = vshrl.u32 %v62, 7
    %v64 = vsub.s32 0, %v63
    %v65 = vrot.slane %v60, %v64
    %v67 = vmul.f32 %v56, %v65
    %v68 = vmul.f32 %v57, %v65
    %v69 = vmul.f32 %v58, %v65
    %v70 = vmul.f32 %v59, %v65
    %v71 = vld [vmem:[#allocation7] sm:$0x1]
    %v73 = vlaneseq
    %v74 = vshrl.u32 %v73, 7
    %v75 = vsub.s32 0, %v74
    %v76 = vrot.slane %v71, %v75
    %v78 = vadd.f32 %v67, %v76
    %v79 = vadd.f32 %v68, %v76
    %v80 = vadd.f32 %v69, %v76
    %v81 = vadd.f32 %v70, %v76
    %vm82 = vcmp.ge.f32.partialorder %v78, 0.0
    %vm83 = vcmp.ge.f32.partialorder %v79, 0.0
    %vm84 = vcmp.ge.f32.partialorder %v80, 0.0
    %vm85 = vcmp.ge.f32.partialorder %v81, 0.0
    %v86 = vmul.f32 %v78, 0.2
    %v87 = vmul.f32 %v79, 0.2
    %v88 = vmul.f32 %v80, 0.2
    %v89 = vmul.f32 %v81, 0.2
    %v90 = vsel %vm82, %v78, %v86
    %v91 = vsel %vm83, %v79, %v87
    %v92 = vsel %vm84, %v80, %v88
    %v93 = vsel %vm85, %v81, %v89
    %v94 = vpack.c.bf16 %v91, %v90
    %v95 = vpack.c.bf16 %v93, %v92
    %v98 = vunpack.c.l.b16 %v94
    %v99 = vunpack.c.h.b16 %v94
    %v100 = vunpack.c.l.b16 %v95
    %v101 = vunpack.c.h.b16 %v95
    %v102 = vpack.c.b16 %v98, %v98
    %v103 = vpack.c.b16 %v99, %v99
    %v104 = vpack.c.b16 %v100, %v100
    %v105 = vpack.c.b16 %v101, %v101
    %110 = vst [vmem:[#allocation8] sm:$0xf] %v102
    %111 = vst [vmem:[#allocation8 + $0x4] sm:$0xf] %v103
    %112 = vst [vmem:[#allocation8 + $0x8] sm:$0xf] %v104
    %113 = vst [vmem:[#allocation8 + $0xc] sm:$0xf] %v105
    // Predicated region
    $region26: #{dc_discriminator_forward.8} parent=1 // pred_check
      _
    $region27: #{dc_discriminator_forward.8} parent=1 // pred_check_branch
      %115 = sbr.rel (0) target = $region29
    $region28: #{dc_discriminator_forward.8} parent=1 // pred_region
      %s117 = ssub.s32 256, 256
      %118 = vsyncadd [#allocation4], %s117
      %s119 = sshll.u32 [#allocation8], 4
      %s120 = int_to_ptr.vmem [resolvable:$true] %s119
      %125 = dma.vmem_to_hbm [thread:$0]  %s120, 256, %s3, [#allocation4], 64, 64, 4
    $region29: #{dc_discriminator_forward.8} parent=1 // pred_fallthru
      _
    // Predicated region
    $region30: #{dc_discriminator_forward.8} parent=1 // pred_check
      _
    $region31: #{dc_discriminator_forward.8} parent=1 // pred_check_branch
      %127 = sbr.rel (0) target = $region33
    $region32: #{dc_discriminator_forward.8} parent=1 // pred_region
      %128 = dma.done [#allocation4], 256
    $region33: #{dc_discriminator_forward.8} parent=1 // pred_fallthru
      _
    %129 = vsyncpa [#allocation3], 1
    %130 = vsyncpa [#allocation6], 1
    %131 = vsyncpa [#allocation4], 1

// kernel: dc_discriminator_forward.7
$region0: #{dc_discriminator_forward.7}
  #allocation0 [shape = 'u32[]', space=smem, size = 0x4, offset = 0x4, fixed_abs, tag = 'smem constant byte address 0x4 - core index']
  #allocation1 [shape = 'u32[144,128]{1,0:T(1,128)}', space=vmem, size = 0x12000, scoped, tag = 'internal scratch']
  %s0 = inlined_call_operand.hbm [shape: bf16[32,128], index: 0, kind: input, shape index: {}]
  %s1 = inlined_call_operand.hbm [shape: bf16[128,128], index: 1, kind: input, shape index: {}]
  %s2 = inlined_call_operand.hbm [shape: bf16[32,128], index: 2, kind: output, shape index: {0}]
  %s3 = inlined_call_operand.hbm [shape: f32[8,128], index: 3, kind: output, shape index: {1}]
  %4 = xla_tuple %s2, %s3
  %s5 = sld [smem:[#allocation0]]
  $region34: #{dc_discriminator_forward.7} parent=0
    _
  %s7 = ssub.s32 1, %s5
  %s8 = scalar_select 0, %s7, %s5
  $region1: #{dc_discriminator_forward.7} parent=0
    #allocation2 [shape = 'u8[8192]{0}', space=vmem, size = 0x2000, scoped, tag = 'input window, operand 0, single buffered']
    #allocation3 [shape = 's32[1]{0}', space=sflag, size = 0x4, scoped, tag = 'scoped memory for dc_discriminator_forward.7']
    #allocation4 [shape = 's32[1]{0}', space=sflag, size = 0x4, scoped, tag = 'scoped memory for dc_discriminator_forward.7']
    #allocation5 [shape = 'u8[32768]{0}', space=vmem, size = 0x8000, scoped, tag = 'input window, operand 1, single buffered']
    #allocation6 [shape = 's32[1]{0}', space=sflag, size = 0x4, scoped, tag = 'scoped memory for dc_discriminator_forward.7']
    #allocation7 [shape = 'u8[8192]{0}', space=vmem, size = 0x2000, scoped, tag = 'output window, operand 0, single buffered']
    #allocation8 [shape = 'u8[4096]{0}', space=vmem, size = 0x1000, scoped, tag = 'output window, operand 1, single buffered']
    #allocation9 [shape = 's32[1]{0}', space=sflag, size = 0x4, scoped, tag = 'scoped memory for dc_discriminator_forward.7']
    %9 = vsyncpa [#allocation3], 0
    %10 = vsyncpa [#allocation6], 0
    %11 = vsyncpa [#allocation4], 0
    %12 = vsyncpa [#allocation9], 0
    // Predicated region
    $region2: #{dc_discriminator_forward.7} parent=1 // pred_check
      _
    $region3: #{dc_discriminator_forward.7} parent=1 // pred_check_branch
      %14 = sbr.rel (0) target = $region5
    $region4: #{dc_discriminator_forward.7} parent=1 // pred_region
      %s16 = ssub.s32 256, 256
      %17 = vsyncadd [#allocation3], %s16
      %s18 = sshll.u32 [#allocation2], 4
      %s19 = int_to_ptr.vmem [resolvable:$true] %s18
      %24 = dma.hbm_to_vmem [thread:$0]  %s0, 256, %s19, [#allocation3], 64, 64, 4
    $region5: #{dc_discriminator_forward.7} parent=1 // pred_fallthru
      _
    // Predicated region
    $region6: #{dc_discriminator_forward.7} parent=1 // pred_check
      _
    $region7: #{dc_discriminator_forward.7} parent=1 // pred_check_branch
      %26 = sbr.rel (0) target = $region9
    $region8: #{dc_discriminator_forward.7} parent=1 // pred_region
      %s28 = ssub.s32 1024, 1024
      %29 = vsyncadd [#allocation6], %s28
      %s30 = sshll.u32 [#allocation5], 4
      %s31 = int_to_ptr.vmem [resolvable:$true] %s30
      %36 = dma.hbm_to_vmem [thread:$0]  %s1, 1024, %s31, [#allocation6], 64, 64, 4
    $region9: #{dc_discriminator_forward.7} parent=1 // pred_fallthru
      _
    // Predicated region
    $region10: #{dc_discriminator_forward.7} parent=1 // pred_check
      _
    $region11: #{dc_discriminator_forward.7} parent=1 // pred_check_branch
      %38 = sbr.rel (0) target = $region13
    $region12: #{dc_discriminator_forward.7} parent=1 // pred_region
      %39 = dma.done [#allocation3], 256
    $region13: #{dc_discriminator_forward.7} parent=1 // pred_fallthru
      _
    // Predicated region
    $region14: #{dc_discriminator_forward.7} parent=1 // pred_check
      _
    $region15: #{dc_discriminator_forward.7} parent=1 // pred_check_branch
      %41 = sbr.rel (0) target = $region17
    $region16: #{dc_discriminator_forward.7} parent=1 // pred_region
      %42 = dma.done [#allocation6], 1024
    $region17: #{dc_discriminator_forward.7} parent=1 // pred_fallthru
      _
    %v44 = vld [vmem:[#allocation2] sm:$0xf]
    %v45 = vld [vmem:[#allocation2 + $0x4] sm:$0xf]
    %v46 = vld [vmem:[#allocation2 + $0x8] sm:$0xf]
    %v47 = vld [vmem:[#allocation2 + $0xc] sm:$0xf]
    %v48 = vld [vmem:[#allocation5] sm:$0xf]
    %v49 = vld [vmem:[#allocation5 + $0x4] sm:$0xf]
    %v50 = vld [vmem:[#allocation5 + $0x8] sm:$0xf]
    %v51 = vld [vmem:[#allocation5 + $0xc] sm:$0xf]
    %v52 = vld [vmem:[#allocation5 + $0x10] sm:$0xf]
    %v53 = vld [vmem:[#allocation5 + $0x14] sm:$0xf]
    %v54 = vld [vmem:[#allocation5 + $0x18] sm:$0xf]
    %v55 = vld [vmem:[#allocation5 + $0x1c] sm:$0xf]
    %v56 = vld [vmem:[#allocation5 + $0x20] sm:$0xf]
    %v57 = vld [vmem:[#allocation5 + $0x24] sm:$0xf]
    %v58 = vld [vmem:[#allocation5 + $0x28] sm:$0xf]
    %v59 = vld [vmem:[#allocation5 + $0x2c] sm:$0xf]
    %v60 = vld [vmem:[#allocation5 + $0x30] sm:$0xf]
    %v61 = vld [vmem:[#allocation5 + $0x34] sm:$0xf]
    %v62 = vld [vmem:[#allocation5 + $0x38] sm:$0xf]
    %v63 = vld [vmem:[#allocation5 + $0x3c] sm:$0xf]
    %v68 = vunpack.c.l.b16 %v44
    %v69 = vunpack.c.l.b16 %v45
    %v70 = vunpack.c.l.b16 %v46
    %v71 = vunpack.c.l.b16 %v47
    %v72 = vpack.c.b16 %v69, %v68
    %v73 = vpack.c.b16 %v71, %v70
    %v92 = vunpack.c.l.b16 %v48
    %v93 = vunpack.c.l.b16 %v49
    %v94 = vunpack.c.l.b16 %v50
    %v95 = vunpack.c.l.b16 %v51
    %v96 = vunpack.c.l.b16 %v52
    %v97 = vunpack.c.l.b16 %v53
    %v98 = vunpack.c.l.b16 %v54
    %v99 = vunpack.c.l.b16 %v55
    %v100 = vunpack.c.l.b16 %v56
    %v101 = vunpack.c.l.b16 %v57
    %v102 = vunpack.c.l.b16 %v58
    %v103 = vunpack.c.l.b16 %v59
    %v104 = vunpack.c.l.b16 %v60
    %v105 = vunpack.c.l.b16 %v61
    %v106 = vunpack.c.l.b16 %v62
    %v107 = vunpack.c.l.b16 %v63
    %v108 = vpack.c.b16 %v93, %v92
    %v109 = vpack.c.b16 %v95, %v94
    %v110 = vpack.c.b16 %v97, %v96
    %v111 = vpack.c.b16 %v99, %v98
    %v112 = vpack.c.b16 %v101, %v100
    %v113 = vpack.c.b16 %v103, %v102
    %v114 = vpack.c.b16 %v105, %v104
    %v115 = vpack.c.b16 %v107, %v106
    %124 = vmatprep.subr.bf16.mxu0 0
    %125 = vmatpush1.bf16.msra.mxu0 %v108
    %126 = vmatprep.subr.bf16.mxu0 0
    %127 = vmatpush1.bf16.msra.mxu0 %v109
    %128 = vmatprep.subr.bf16.mxu0 0
    %129 = vmatpush1.bf16.msra.mxu0 %v110
    %130 = vmatprep.subr.bf16.mxu0 0
    %131 = vmatpush1.bf16.msra.mxu0 %v111
    %132 = vmatprep.subr.bf16.mxu0 0
    %133 = vmatpush1.bf16.msra.mxu0 %v112
    %134 = vmatprep.subr.bf16.mxu0 0
    %135 = vmatpush1.bf16.msra.mxu0 %v113
    %136 = vmatprep.subr.bf16.mxu0 0
    %137 = vmatpush1.bf16.msra.mxu0 %v114
    %138 = vmatprep.subr.bf16.mxu0 0
    %139 = vmatpush1.bf16.msra.mxu0 %v115
    %140 = vmatprep.subr.bf16.mxu0 0
    %141 = vmatpush1.bf16.msra.mxu0 0
    %142 = vmatprep.subr.bf16.mxu0 0
    %143 = vmatpush1.bf16.msra.mxu0 0
    %144 = vmatprep.subr.bf16.mxu0 0
    %145 = vmatpush1.bf16.msra.mxu0 0
    %146 = vmatprep.subr.bf16.mxu0 0
    %147 = vmatpush1.bf16.msra.mxu0 0
    %148 = vmatprep.subr.bf16.mxu0 0
    %149 = vmatpush1.bf16.msra.mxu0 0
    %150 = vmatprep.subr.bf16.mxu0 0
    %151 = vmatpush1.bf16.msra.mxu0 0
    %152 = vmatprep.subr.bf16.mxu0 0
    %153 = vmatpush1.bf16.msra.mxu0 0
    %154 = vmatprep.subr.bf16.mxu0 0
    %155 = vmatpush1.bf16.msra.mxu0 0
    %156 = vmatprep.mubr.bf16.mxu0 0
    %157 = vmatmul.mubr.bf16.gmra.mrb[0].mxu0 %v72
    %v158 = vpop.f32.mrb[0].mxu0
    %v159 = vadd.f32 0.0, %v158
    %v160 = vpop.f32.mrb[0].mxu0
    %v161 = vpop.f32.mrb[0].mxu0
    %v162 = vadd.f32 0.0, %v161
    %v163 = vpop.f32.mrb[0].mxu0
    %164 = vmatprep.mubr.bf16.mxu0 0
    %165 = vmatmul.mubr.bf16.gmra.mrb[0].mxu0 %v73
    %v166 = vpop.f32.mrb[0].mxu0
    %v167 = vadd.f32 0.0, %v166
    %v168 = vpop.f32.mrb[0].mxu0
    %v169 = vpop.f32.mrb[0].mxu0
    %v170 = vadd.f32 0.0, %v169
    %v171 = vpop.f32.mrb[0].mxu0
    %172 = vdwg.mxu0
    %v173 = vpack.c.bf16 %v162, %v159
    %v174 = vpack.c.bf16 %v170, %v167
    %v177 = vunpack.c.l.b16 %v173
    %v178 = vunpack.c.h.b16 %v173
    %v179 = vunpack.c.l.b16 %v174
    %v180 = vunpack.c.h.b16 %v174
    %v181 = vpack.c.b16 %v177, %v177
    %v182 = vpack.c.b16 %v178, %v178
    %v183 = vpack.c.b16 %v179, %v179
    %v184 = vpack.c.b16 %v180, %v180
    %189 = vst [vmem:[#allocation7] sm:$0xf] %v181
    %190 = vst [vmem:[#allocation7 + $0x4] sm:$0xf] %v182
    %191 = vst [vmem:[#allocation7 + $0x8] sm:$0xf] %v183
    %192 = vst [vmem:[#allocation7 + $0xc] sm:$0xf] %v184
    %v193 = vadd.f32 %v159, %v162
    %v194 = vadd.f32 %v193, %v167
    %v195 = vadd.f32 %v194, %v170
    %v196 = vrot.slane %v195, 4
    %v197 = vadd.f32 %v195, %v196
    %v198 = vrot.slane %v197, 2
    %v199 = vadd.f32 %v197, %v198
    %v200 = vrot.slane %v199, 1
    %v201 = vadd.f32 %v199, %v200
    %v202 = vmul.f32 %v159, %v159
    %v203 = vmul.f32 %v162, %v162
    %v204 = vmul.f32 %v167, %v167
    %v205 = vmul.f32 %v170, %v170
    %v206 = vadd.f32 %v202, %v203
    %v207 = vadd.f32 %v206, %v204
    %v208 = vadd.f32 %v207, %v205
    %v209 = vrot.slane %v208, 4
    %v210 = vadd.f32 %v208, %v209
    %v211 = vrot.slane %v210, 2
    %v212 = vadd.f32 %v210, %v211
    %v213 = vrot.slane %v212, 1
    %v214 = vadd.f32 %v212, %v213
    %v215 = vlaneseq
    %v216 = vshrl.u32 %v215, 7
    %vm217 = vcmp.eq.s32.totalorder %v216, 0
    %vm218 = vcmp.eq.s32.totalorder %v216, 1
    %v219 = vsel %vm218, %v214, 0.0
    %v220 = vsel %vm217, %v201, %v219
    %221 = vst [vmem:[#allocation8] sm:$0xff] %v220
    // Predicated region
    $region18: #{dc_discriminator_forward.7} parent=1 // pred_check
      _
    $region19: #{dc_discriminator_forward.7} parent=1 // pred_check_branch
      %223 = sbr.rel (0) target = $region21
    $region20: #{dc_discriminator_forward.7} parent=1 // pred_region
      %s225 = ssub.s32 256, 256
      %226 = vsyncadd [#allocation4], %s225
      %s227 = sshll.u32 [#allocation7], 4
      %s228 = int_to_ptr.vmem [resolvable:$true] %s227
      %233 = dma.vmem_to_hbm [thread:$0]  %s228, 256, %s2, [#allocation4], 64, 64, 4
    $region21: #{dc_discriminator_forward.7} parent=1 // pred_fallthru
      _
    // Predicated region
    $region22: #{dc_discriminator_forward.7} parent=1 // pred_check
      _
    $region23: #{dc_discriminator_forward.7} parent=1 // pred_check_branch
      %235 = sbr.rel (0) target = $region25
    $region24: #{dc_discriminator_forward.7} parent=1 // pred_region
      %s237 = ssub.s32 128, 128
      %238 = vsyncadd [#allocation9], %s237
      %s240 = sshll.u32 [#allocation8], 4
      %s241 = int_to_ptr.vmem [resolvable:$true] %s240
      %243 = dma.vmem_to_hbm [thread:$0]  %s241, 128, %s3, [#allocation9]
    $region25: #{dc_discriminator_forward.7} parent=1 // pred_fallthru
      _
    // Predicated region
    $region26: #{dc_discriminator_forward.7} parent=1 // pred_check
      _
    $region27: #{dc_discriminator_forward.7} parent=1 // pred_check_branch
      %245 = sbr.rel (0) target = $region29
    $region28: #{dc_discriminator_forward.7} parent=1 // pred_region
      %246 = dma.done [#allocation4], 256
    $region29: #{dc_discriminator_forward.7} parent=1 // pred_fallthru
      _
    // Predicated region
    $region30: #{dc_discriminator_forward.7} parent=1 // pred_check
      _
    $region31: #{dc_discriminator_forward.7} parent=1 // pred_check_branch
      %248 = sbr.rel (0) target = $region33
    $region32: #{dc_discriminator_forward.7} parent=1 // pred_region
      %249 = dma.done [#allocation9], 128
    $region33: #{dc_discriminator_forward.7} parent=1 // pred_fallthru
      _
    %250 = vsyncpa [#allocation3], 1
    %251 = vsyncpa [#allocation6], 1
    %252 = vsyncpa [#allocation4], 1
    %253 = vsyncpa [#allocation9], 1

// kernel: dc_discriminator_forward.10
$region0: #{dc_discriminator_forward.10}
  #allocation0 [shape = 'u32[]', space=smem, size = 0x4, offset = 0x4, fixed_abs, tag = 'smem constant byte address 0x4 - core index']
  #allocation1 [shape = 'u32[144,128]{1,0:T(1,128)}', space=vmem, size = 0x12000, scoped, tag = 'internal scratch']
  %s0 = inlined_call_operand.hbm [shape: bf16[8,128], index: 0, kind: input, shape index: {}]
  %s1 = inlined_call_operand.hbm [shape: f32[1,128], index: 1, kind: input, shape index: {}]
  %s2 = inlined_call_operand.hbm [shape: f32[1,128], index: 2, kind: input, shape index: {}]
  %s3 = inlined_call_operand.hbm [shape: bf16[8,128], index: 3, kind: output, shape index: {}]
  %s4 = sld [smem:[#allocation0]]
  $region34: #{dc_discriminator_forward.10} parent=0
    _
  %s6 = ssub.s32 1, %s4
  %s7 = scalar_select 0, %s6, %s4
  $region1: #{dc_discriminator_forward.10} parent=0
    #allocation2 [shape = 'u8[2048]{0}', space=vmem, size = 0x800, scoped, tag = 'input window, operand 0, single buffered']
    #allocation3 [shape = 's32[1]{0}', space=sflag, size = 0x4, scoped, tag = 'scoped memory for dc_discriminator_forward.10']
    #allocation4 [shape = 's32[1]{0}', space=sflag, size = 0x4, scoped, tag = 'scoped memory for dc_discriminator_forward.10']
    #allocation5 [shape = 'u8[512]{0}', space=vmem, size = 0x400, scoped, tag = 'input window, operand 1, single buffered']
    #allocation6 [shape = 's32[1]{0}', space=sflag, size = 0x4, scoped, tag = 'scoped memory for dc_discriminator_forward.10']
    #allocation7 [shape = 'u8[512]{0}', space=vmem, size = 0x400, scoped, tag = 'input window, operand 2, single buffered']
    #allocation8 [shape = 'u8[2048]{0}', space=vmem, size = 0x800, scoped, tag = 'output window, operand 0, single buffered']
    %8 = vsyncpa [#allocation3], 0
    %9 = vsyncpa [#allocation6], 0
    %10 = vsyncpa [#allocation4], 0
    // Predicated region
    $region2: #{dc_discriminator_forward.10} parent=1 // pred_check
      _
    $region3: #{dc_discriminator_forward.10} parent=1 // pred_check_branch
      %12 = sbr.rel (0) target = $region5
    $region4: #{dc_discriminator_forward.10} parent=1 // pred_region
      %s14 = ssub.s32 64, 64
      %15 = vsyncadd [#allocation3], %s14
      %s17 = sshll.u32 [#allocation2], 4
      %s18 = int_to_ptr.vmem [resolvable:$true] %s17
      %20 = dma.hbm_to_vmem [thread:$0]  %s0, 64, %s18, [#allocation3]
    $region5: #{dc_discriminator_forward.10} parent=1 // pred_fallthru
      _
    // Predicated region
    $region6: #{dc_discriminator_forward.10} parent=1 // pred_check
      _
    $region7: #{dc_discriminator_forward.10} parent=1 // pred_check_branch
      %22 = sbr.rel (0) target = $region9
    $region8: #{dc_discriminator_forward.10} parent=1 // pred_region
      %s24 = ssub.s32 16, 16
      %25 = vsyncadd [#allocation6], %s24
      %s27 = sshll.u32 [#allocation5], 4
      %s28 = int_to_ptr.vmem [resolvable:$true] %s27
      %30 = dma.hbm_to_vmem [thread:$0]  %s1, 16, %s28, [#allocation6]
    $region9: #{dc_discriminator_forward.10} parent=1 // pred_fallthru
      _
    // Predicated region
    $region10: #{dc_discriminator_forward.10} parent=1 // pred_check
      _
    $region11: #{dc_discriminator_forward.10} parent=1 // pred_check_branch
      %32 = sbr.rel (0) target = $region13
    $region12: #{dc_discriminator_forward.10} parent=1 // pred_region
      %s34 = ssub.s32 16, 16
      %35 = vsyncadd [#allocation6], %s34
      %s37 = sshll.u32 [#allocation7], 4
      %s38 = int_to_ptr.vmem [resolvable:$true] %s37
      %40 = dma.hbm_to_vmem [thread:$0]  %s2, 16, %s38, [#allocation6]
    $region13: #{dc_discriminator_forward.10} parent=1 // pred_fallthru
      _
    // Predicated region
    $region14: #{dc_discriminator_forward.10} parent=1 // pred_check
      _
    $region15: #{dc_discriminator_forward.10} parent=1 // pred_check_branch
      %42 = sbr.rel (0) target = $region17
    $region16: #{dc_discriminator_forward.10} parent=1 // pred_region
      %43 = dma.done [#allocation3], 64
    $region17: #{dc_discriminator_forward.10} parent=1 // pred_fallthru
      _
    // Predicated region
    $region18: #{dc_discriminator_forward.10} parent=1 // pred_check
      _
    $region19: #{dc_discriminator_forward.10} parent=1 // pred_check_branch
      %45 = sbr.rel (0) target = $region21
    $region20: #{dc_discriminator_forward.10} parent=1 // pred_region
      %46 = dma.done [#allocation6], 16
    $region21: #{dc_discriminator_forward.10} parent=1 // pred_fallthru
      _
    // Predicated region
    $region22: #{dc_discriminator_forward.10} parent=1 // pred_check
      _
    $region23: #{dc_discriminator_forward.10} parent=1 // pred_check_branch
      %48 = sbr.rel (0) target = $region25
    $region24: #{dc_discriminator_forward.10} parent=1 // pred_region
      %49 = dma.done [#allocation6], 16
    $region25: #{dc_discriminator_forward.10} parent=1 // pred_fallthru
      _
    %v50 = vld [vmem:[#allocation2] sm:$0xf]
    %v51 = vunpack.c.l.bf16 %v50
    %v52 = vld [vmem:[#allocation5] sm:$0x1]
    %v54 = vlaneseq
    %v55 = vshrl.u32 %v54, 7
    %v56 = vsub.s32 0, %v55
    %v57 = vrot.slane %v52, %v56
    %v59 = vmul.f32 %v51, %v57
    %v60 = vld [vmem:[#allocation7] sm:$0x1]
    %v62 = vlaneseq
    %v63 = vshrl.u32 %v62, 7
    %v64 = vsub.s32 0, %v63
    %v65 = vrot.slane %v60, %v64
    %v67 = vadd.f32 %v59, %v65
    %vm68 = vcmp.ge.f32.partialorder %v67, 0.0
    %v69 = vmul.f32 %v67, 0.2
    %v70 = vsel %vm68, %v67, %v69
    %v71 = vpack.c.bf16 %v70, %v70
    %72 = vst [vmem:[#allocation8] sm:$0xf] %v71
    // Predicated region
    $region26: #{dc_discriminator_forward.10} parent=1 // pred_check
      _
    $region27: #{dc_discriminator_forward.10} parent=1 // pred_check_branch
      %74 = sbr.rel (0) target = $region29
    $region28: #{dc_discriminator_forward.10} parent=1 // pred_region
      %s76 = ssub.s32 64, 64
      %77 = vsyncadd [#allocation4], %s76
      %s79 = sshll.u32 [#allocation8], 4
      %s80 = int_to_ptr.vmem [resolvable:$true] %s79
      %82 = dma.vmem_to_hbm [thread:$0]  %s80, 64, %s3, [#allocation4]
    $region29: #{dc_discriminator_forward.10} parent=1 // pred_fallthru
      _
    // Predicated region
    $region30: #{dc_discriminator_forward.10} parent=1 // pred_check
      _
    $region31: #{dc_discriminator_forward.10} parent=1 // pred_check_branch
      %84 = sbr.rel (0) target = $region33
    $region32: #{dc_discriminator_forward.10} parent=1 // pred_region
      %85 = dma.done [#allocation4], 64
    $region33: #{dc_discriminator_forward.10} parent=1 // pred_fallthru
      _
    %86 = vsyncpa [#allocation3], 1
    %87 = vsyncpa [#allocation6], 1
    %88 = vsyncpa [#allocation4], 1

// kernel: dc_discriminator_forward.9
$region0: #{dc_discriminator_forward.9}
  #allocation0 [shape = 'u32[]', space=smem, size = 0x4, offset = 0x4, fixed_abs, tag = 'smem constant byte address 0x4 - core index']
  #allocation1 [shape = 'u32[144,128]{1,0:T(1,128)}', space=vmem, size = 0x12000, scoped, tag = 'internal scratch']
  %s0 = inlined_call_operand.hbm [shape: bf16[8,256], index: 0, kind: input, shape index: {}]
  %s1 = inlined_call_operand.hbm [shape: bf16[256,128], index: 1, kind: input, shape index: {}]
  %s2 = inlined_call_operand.hbm [shape: bf16[8,128], index: 2, kind: output, shape index: {0}]
  %s3 = inlined_call_operand.hbm [shape: f32[8,128], index: 3, kind: output, shape index: {1}]
  %4 = xla_tuple %s2, %s3
  %s5 = sld [smem:[#allocation0]]
  $region34: #{dc_discriminator_forward.9} parent=0
    _
  %s7 = ssub.s32 1, %s5
  %s8 = scalar_select 0, %s7, %s5
  $region1: #{dc_discriminator_forward.9} parent=0
    #allocation2 [shape = 'u8[4096]{0}', space=vmem, size = 0x1000, scoped, tag = 'input window, operand 0, single buffered']
    #allocation3 [shape = 's32[1]{0}', space=sflag, size = 0x4, scoped, tag = 'scoped memory for dc_discriminator_forward.9']
    #allocation4 [shape = 's32[1]{0}', space=sflag, size = 0x4, scoped, tag = 'scoped memory for dc_discriminator_forward.9']
    #allocation5 [shape = 'u8[65536]{0}', space=vmem, size = 0x10000, scoped, tag = 'input window, operand 1, single buffered']
    #allocation6 [shape = 's32[1]{0}', space=sflag, size = 0x4, scoped, tag = 'scoped memory for dc_discriminator_forward.9']
    #allocation7 [shape = 'u8[2048]{0}', space=vmem, size = 0x800, scoped, tag = 'output window, operand 0, single buffered']
    #allocation8 [shape = 'u8[4096]{0}', space=vmem, size = 0x1000, scoped, tag = 'output window, operand 1, single buffered']
    #allocation9 [shape = 's32[1]{0}', space=sflag, size = 0x4, scoped, tag = 'scoped memory for dc_discriminator_forward.9']
    %9 = vsyncpa [#allocation3], 0
    %10 = vsyncpa [#allocation6], 0
    %11 = vsyncpa [#allocation4], 0
    %12 = vsyncpa [#allocation9], 0
    // Predicated region
    $region2: #{dc_discriminator_forward.9} parent=1 // pred_check
      _
    $region3: #{dc_discriminator_forward.9} parent=1 // pred_check_branch
      %14 = sbr.rel (0) target = $region5
    $region4: #{dc_discriminator_forward.9} parent=1 // pred_region
      %s16 = ssub.s32 128, 128
      %17 = vsyncadd [#allocation3], %s16
      %s19 = sshll.u32 [#allocation2], 4
      %s20 = int_to_ptr.vmem [resolvable:$true] %s19
      %22 = dma.hbm_to_vmem [thread:$0]  %s0, 128, %s20, [#allocation3]
    $region5: #{dc_discriminator_forward.9} parent=1 // pred_fallthru
      _
    // Predicated region
    $region6: #{dc_discriminator_forward.9} parent=1 // pred_check
      _
    $region7: #{dc_discriminator_forward.9} parent=1 // pred_check_branch
      %24 = sbr.rel (0) target = $region9
    $region8: #{dc_discriminator_forward.9} parent=1 // pred_region
      %s26 = ssub.s32 2048, 2048
      %27 = vsyncadd [#allocation6], %s26
      %s28 = sshll.u32 [#allocation5], 4
      %s29 = int_to_ptr.vmem [resolvable:$true] %s28
      %34 = dma.hbm_to_vmem [thread:$0]  %s1, 2048, %s29, [#allocation6], 64, 64, 4
    $region9: #{dc_discriminator_forward.9} parent=1 // pred_fallthru
      _
    // Predicated region
    $region10: #{dc_discriminator_forward.9} parent=1 // pred_check
      _
    $region11: #{dc_discriminator_forward.9} parent=1 // pred_check_branch
      %36 = sbr.rel (0) target = $region13
    $region12: #{dc_discriminator_forward.9} parent=1 // pred_region
      %37 = dma.done [#allocation3], 128
    $region13: #{dc_discriminator_forward.9} parent=1 // pred_fallthru
      _
    // Predicated region
    $region14: #{dc_discriminator_forward.9} parent=1 // pred_check
      _
    $region15: #{dc_discriminator_forward.9} parent=1 // pred_check_branch
      %39 = sbr.rel (0) target = $region17
    $region16: #{dc_discriminator_forward.9} parent=1 // pred_region
      %40 = dma.done [#allocation6], 2048
    $region17: #{dc_discriminator_forward.9} parent=1 // pred_fallthru
      _
    %v42 = vld [vmem:[#allocation2] sm:$0xff]
    %v43 = vld [vmem:[#allocation5] sm:$0xf]
    %v44 = vld [vmem:[#allocation5 + $0x4] sm:$0xf]
    %v45 = vld [vmem:[#allocation5 + $0x8] sm:$0xf]
    %v46 = vld [vmem:[#allocation5 + $0xc] sm:$0xf]
    %v47 = vld [vmem:[#allocation5 + $0x10] sm:$0xf]
    %v48 = vld [vmem:[#allocation5 + $0x14] sm:$0xf]
    %v49 = vld [vmem:[#allocation5 + $0x18] sm:$0xf]
    %v50 = vld [vmem:[#allocation5 + $0x1c] sm:$0xf]
    %v51 = vld [vmem:[#allocation5 + $0x20] sm:$0xf]
    %v52 = vld [vmem:[#allocation5 + $0x24] sm:$0xf]
    %v53 = vld [vmem:[#allocation5 + $0x28] sm:$0xf]
    %v54 = vld [vmem:[#allocation5 + $0x2c] sm:$0xf]
    %v55 = vld [vmem:[#allocation5 + $0x30] sm:$0xf]
    %v56 = vld [vmem:[#allocation5 + $0x34] sm:$0xf]
    %v57 = vld [vmem:[#allocation5 + $0x38] sm:$0xf]
    %v58 = vld [vmem:[#allocation5 + $0x3c] sm:$0xf]
    %v59 = vld [vmem:[#allocation5 + $0x40] sm:$0xf]
    %v60 = vld [vmem:[#allocation5 + $0x44] sm:$0xf]
    %v61 = vld [vmem:[#allocation5 + $0x48] sm:$0xf]
    %v62 = vld [vmem:[#allocation5 + $0x4c] sm:$0xf]
    %v63 = vld [vmem:[#allocation5 + $0x50] sm:$0xf]
    %v64 = vld [vmem:[#allocation5 + $0x54] sm:$0xf]
    %v65 = vld [vmem:[#allocation5 + $0x58] sm:$0xf]
    %v66 = vld [vmem:[#allocation5 + $0x5c] sm:$0xf]
    %v67 = vld [vmem:[#allocation5 + $0x60] sm:$0xf]
    %v68 = vld [vmem:[#allocation5 + $0x64] sm:$0xf]
    %v69 = vld [vmem:[#allocation5 + $0x68] sm:$0xf]
    %v70 = vld [vmem:[#allocation5 + $0x6c] sm:$0xf]
    %v71 = vld [vmem:[#allocation5 + $0x70] sm:$0xf]
    %v72 = vld [vmem:[#allocation5 + $0x74] sm:$0xf]
    %v73 = vld [vmem:[#allocation5 + $0x78] sm:$0xf]
    %v74 = vld [vmem:[#allocation5 + $0x7c] sm:$0xf]
    %v76 = vunpack.c.l.b16 %v42
    %v77 = vunpack.c.h.b16 %v42
    %v78 = vpack.c.b16 %v76, %v76
    %v79 = vpack.c.b16 %v77, %v77
    %v114 = vunpack.c.l.b16 %v43
    %v115 = vunpack.c.l.b16 %v44
    %v116 = vunpack.c.l.b16 %v45
    %v117 = vunpack.c.l.b16 %v46
    %v118 = vunpack.c.l.b16 %v47
    %v119 = vunpack.c.l.b16 %v48
    %v120 = vunpack.c.l.b16 %v49
    %v121 = vunpack.c.l.b16 %v50
    %v122 = vunpack.c.l.b16 %v51
    %v123 = vunpack.c.l.b16 %v52
    %v124 = vunpack.c.l.b16 %v53
    %v125 = vunpack.c.l.b16 %v54
    %v126 = vunpack.c.l.b16 %v55
    %v127 = vunpack.c.l.b16 %v56
    %v128 = vunpack.c.l.b16 %v57
    %v129 = vunpack.c.l.b16 %v58
    %v130 = vunpack.c.l.b16 %v59
    %v131 = vunpack.c.l.b16 %v60
    %v132 = vunpack.c.l.b16 %v61
    %v133 = vunpack.c.l.b16 %v62
    %v134 = vunpack.c.l.b16 %v63
    %v135 = vunpack.c.l.b16 %v64
    %v136 = vunpack.c.l.b16 %v65
    %v137 = vunpack.c.l.b16 %v66
    %v138 = vunpack.c.l.b16 %v67
    %v139 = vunpack.c.l.b16 %v68
    %v140 = vunpack.c.l.b16 %v69
    %v141 = vunpack.c.l.b16 %v70
    %v142 = vunpack.c.l.b16 %v71
    %v143 = vunpack.c.l.b16 %v72
    %v144 = vunpack.c.l.b16 %v73
    %v145 = vunpack.c.l.b16 %v74
    %v146 = vpack.c.b16 %v115, %v114
    %v147 = vpack.c.b16 %v117, %v116
    %v148 = vpack.c.b16 %v119, %v118
    %v149 = vpack.c.b16 %v121, %v120
    %v150 = vpack.c.b16 %v123, %v122
    %v151 = vpack.c.b16 %v125, %v124
    %v152 = vpack.c.b16 %v127, %v126
    %v153 = vpack.c.b16 %v129, %v128
    %v154 = vpack.c.b16 %v131, %v130
    %v155 = vpack.c.b16 %v133, %v132
    %v156 = vpack.c.b16 %v135, %v134
    %v157 = vpack.c.b16 %v137, %v136
    %v158 = vpack.c.b16 %v139, %v138
    %v159 = vpack.c.b16 %v141, %v140
    %v160 = vpack.c.b16 %v143, %v142
    %v161 = vpack.c.b16 %v145, %v144
    %178 = vmatprep.subr.bf16.mxu0 0
    %179 = vmatpush1.bf16.msra.mxu0 %v146
    %180 = vmatprep.subr.bf16.mxu0 0
    %181 = vmatpush1.bf16.msra.mxu0 %v147
    %182 = vmatprep.subr.bf16.mxu0 0
    %183 = vmatpush1.bf16.msra.mxu0 %v148
    %184 = vmatprep.subr.bf16.mxu0 0
    %185 = vmatpush1.bf16.msra.mxu0 %v149
    %186 = vmatprep.subr.bf16.mxu0 0
    %187 = vmatpush1.bf16.msra.mxu0 %v150
    %188 = vmatprep.subr.bf16.mxu0 0
    %189 = vmatpush1.bf16.msra.mxu0 %v151
    %190 = vmatprep.subr.bf16.mxu0 0
    %191 = vmatpush1.bf16.msra.mxu0 %v152
    %192 = vmatprep.subr.bf16.mxu0 0
    %193 = vmatpush1.bf16.msra.mxu0 %v153
    %194 = vmatprep.subr.bf16.mxu0 0
    %195 = vmatpush1.bf16.msra.mxu0 %v154
    %196 = vmatprep.subr.bf16.mxu0 0
    %197 = vmatpush1.bf16.msra.mxu0 %v155
    %198 = vmatprep.subr.bf16.mxu0 0
    %199 = vmatpush1.bf16.msra.mxu0 %v156
    %200 = vmatprep.subr.bf16.mxu0 0
    %201 = vmatpush1.bf16.msra.mxu0 %v157
    %202 = vmatprep.subr.bf16.mxu0 0
    %203 = vmatpush1.bf16.msra.mxu0 %v158
    %204 = vmatprep.subr.bf16.mxu0 0
    %205 = vmatpush1.bf16.msra.mxu0 %v159
    %206 = vmatprep.subr.bf16.mxu0 0
    %207 = vmatpush1.bf16.msra.mxu0 %v160
    %208 = vmatprep.subr.bf16.mxu0 0
    %209 = vmatpush1.bf16.msra.mxu0 %v161
    %210 = vmatprep.mubr.bf16.mxu0 %v79
    %211 = vmatmul.mubr.bf16.gmra.mrb[0].mxu0 %v78
    %v212 = vpop.f32.mrb[0].mxu0
    %v213 = vadd.f32 0.0, %v212
    %v214 = vpop.f32.mrb[0].mxu0
    %v215 = vpop.f32.mrb[0].mxu0
    %v216 = vpop.f32.mrb[0].mxu0
    %217 = vdwg.mxu0
    %v218 = vpack.c.bf16 %v213, %v213
    %219 = vst [vmem:[#allocation7] sm:$0xf] %v218
    %v220 = vrot.slane %v213, 4
    %v221 = vadd.f32 %v213, %v220
    %v222 = vrot.slane %v221, 2
    %v223 = vadd.f32 %v221, %v222
    %v224 = vrot.slane %v223, 1
    %v225 = vadd.f32 %v223, %v224
    %v226 = vmul.f32 %v213, %v213
    %v227 = vrot.slane %v226, 4
    %v228 = vadd.f32 %v226, %v227
    %v229 = vrot.slane %v228, 2
    %v230 = vadd.f32 %v228, %v229
    %v231 = vrot.slane %v230, 1
    %v232 = vadd.f32 %v230, %v231
    %v233 = vlaneseq
    %v234 = vshrl.u32 %v233, 7
    %vm235 = vcmp.eq.s32.totalorder %v234, 0
    %vm236 = vcmp.eq.s32.totalorder %v234, 1
    %v237 = vsel %vm236, %v232, 0.0
    %v238 = vsel %vm235, %v225, %v237
    %239 = vst [vmem:[#allocation8] sm:$0xff] %v238
    // Predicated region
    $region18: #{dc_discriminator_forward.9} parent=1 // pred_check
      _
    $region19: #{dc_discriminator_forward.9} parent=1 // pred_check_branch
      %241 = sbr.rel (0) target = $region21
    $region20: #{dc_discriminator_forward.9} parent=1 // pred_region
      %s243 = ssub.s32 64, 64
      %244 = vsyncadd [#allocation4], %s243
      %s246 = sshll.u32 [#allocation7], 4
      %s247 = int_to_ptr.vmem [resolvable:$true] %s246
      %249 = dma.vmem_to_hbm [thread:$0]  %s247, 64, %s2, [#allocation4]
    $region21: #{dc_discriminator_forward.9} parent=1 // pred_fallthru
      _
    // Predicated region
    $region22: #{dc_discriminator_forward.9} parent=1 // pred_check
      _
    $region23: #{dc_discriminator_forward.9} parent=1 // pred_check_branch
      %251 = sbr.rel (0) target = $region25
    $region24: #{dc_discriminator_forward.9} parent=1 // pred_region
      %s253 = ssub.s32 128, 128
      %254 = vsyncadd [#allocation9], %s253
      %s256 = sshll.u32 [#allocation8], 4
      %s257 = int_to_ptr.vmem [resolvable:$true] %s256
      %259 = dma.vmem_to_hbm [thread:$0]  %s257, 128, %s3, [#allocation9]
    $region25: #{dc_discriminator_forward.9} parent=1 // pred_fallthru
      _
    // Predicated region
    $region26: #{dc_discriminator_forward.9} parent=1 // pred_check
      _
    $region27: #{dc_discriminator_forward.9} parent=1 // pred_check_branch
      %261 = sbr.rel (0) target = $region29
    $region28: #{dc_discriminator_forward.9} parent=1 // pred_region
      %262 = dma.done [#allocation4], 64
    $region29: #{dc_discriminator_forward.9} parent=1 // pred_fallthru
      _
    // Predicated region
    $region30: #{dc_discriminator_forward.9} parent=1 // pred_check
      _
    $region31: #{dc_discriminator_forward.9} parent=1 // pred_check_branch
      %264 = sbr.rel (0) target = $region33
    $region32: #{dc_discriminator_forward.9} parent=1 // pred_region
      %265 = dma.done [#allocation9], 128
    $region33: #{dc_discriminator_forward.9} parent=1 // pred_fallthru
      _
    %266 = vsyncpa [#allocation3], 1
    %267 = vsyncpa [#allocation6], 1
    %268 = vsyncpa [#allocation4], 1
    %269 = vsyncpa [#allocation9], 1

// kernel: dc_discriminator_forward.11
$region0: #{dc_discriminator_forward.11}
  #allocation0 [shape = 'u32[]', space=smem, size = 0x4, offset = 0x4, fixed_abs, tag = 'smem constant byte address 0x4 - core index']
  #allocation1 [shape = 'u32[144,128]{1,0:T(1,128)}', space=vmem, size = 0x12000, scoped, tag = 'internal scratch']
  %s0 = inlined_call_operand.hbm [shape: bf16[8,128], index: 0, kind: input, shape index: {}]
  %s1 = inlined_call_operand.hbm [shape: bf16[128,128], index: 1, kind: input, shape index: {}]
  %s2 = inlined_call_operand.hbm [shape: f32[8,128], index: 2, kind: output, shape index: {}]
  %s3 = sld [smem:[#allocation0]]
  $region26: #{dc_discriminator_forward.11} parent=0
    _
  %s5 = ssub.s32 1, %s3
  %s6 = scalar_select 0, %s5, %s3
  $region1: #{dc_discriminator_forward.11} parent=0
    #allocation2 [shape = 'u8[2048]{0}', space=vmem, size = 0x800, scoped, tag = 'input window, operand 0, single buffered']
    #allocation3 [shape = 's32[1]{0}', space=sflag, size = 0x4, scoped, tag = 'scoped memory for dc_discriminator_forward.11']
    #allocation4 [shape = 's32[1]{0}', space=sflag, size = 0x4, scoped, tag = 'scoped memory for dc_discriminator_forward.11']
    #allocation5 [shape = 'u8[32768]{0}', space=vmem, size = 0x8000, scoped, tag = 'input window, operand 1, single buffered']
    #allocation6 [shape = 's32[1]{0}', space=sflag, size = 0x4, scoped, tag = 'scoped memory for dc_discriminator_forward.11']
    #allocation7 [shape = 'u8[4096]{0}', space=vmem, size = 0x1000, scoped, tag = 'output window, operand 0, single buffered']
    %7 = vsyncpa [#allocation3], 0
    %8 = vsyncpa [#allocation6], 0
    %9 = vsyncpa [#allocation4], 0
    // Predicated region
    $region2: #{dc_discriminator_forward.11} parent=1 // pred_check
      _
    $region3: #{dc_discriminator_forward.11} parent=1 // pred_check_branch
      %11 = sbr.rel (0) target = $region5
    $region4: #{dc_discriminator_forward.11} parent=1 // pred_region
      %s13 = ssub.s32 64, 64
      %14 = vsyncadd [#allocation3], %s13
      %s16 = sshll.u32 [#allocation2], 4
      %s17 = int_to_ptr.vmem [resolvable:$true] %s16
      %19 = dma.hbm_to_vmem [thread:$0]  %s0, 64, %s17, [#allocation3]
    $region5: #{dc_discriminator_forward.11} parent=1 // pred_fallthru
      _
    // Predicated region
    $region6: #{dc_discriminator_forward.11} parent=1 // pred_check
      _
    $region7: #{dc_discriminator_forward.11} parent=1 // pred_check_branch
      %21 = sbr.rel (0) target = $region9
    $region8: #{dc_discriminator_forward.11} parent=1 // pred_region
      %s23 = ssub.s32 1024, 1024
      %24 = vsyncadd [#allocation6], %s23
      %s25 = sshll.u32 [#allocation5], 4
      %s26 = int_to_ptr.vmem [resolvable:$true] %s25
      %31 = dma.hbm_to_vmem [thread:$0]  %s1, 1024, %s26, [#allocation6], 64, 64, 4
    $region9: #{dc_discriminator_forward.11} parent=1 // pred_fallthru
      _
    // Predicated region
    $region10: #{dc_discriminator_forward.11} parent=1 // pred_check
      _
    $region11: #{dc_discriminator_forward.11} parent=1 // pred_check_branch
      %33 = sbr.rel (0) target = $region13
    $region12: #{dc_discriminator_forward.11} parent=1 // pred_region
      %34 = dma.done [#allocation3], 64
    $region13: #{dc_discriminator_forward.11} parent=1 // pred_fallthru
      _
    // Predicated region
    $region14: #{dc_discriminator_forward.11} parent=1 // pred_check
      _
    $region15: #{dc_discriminator_forward.11} parent=1 // pred_check_branch
      %36 = sbr.rel (0) target = $region17
    $region16: #{dc_discriminator_forward.11} parent=1 // pred_region
      %37 = dma.done [#allocation6], 1024
    $region17: #{dc_discriminator_forward.11} parent=1 // pred_fallthru
      _
    %v39 = vld [vmem:[#allocation2] sm:$0xf]
    %v40 = vld [vmem:[#allocation5] sm:$0xf]
    %v41 = vld [vmem:[#allocation5 + $0x4] sm:$0xf]
    %v42 = vld [vmem:[#allocation5 + $0x8] sm:$0xf]
    %v43 = vld [vmem:[#allocation5 + $0xc] sm:$0xf]
    %v44 = vld [vmem:[#allocation5 + $0x10] sm:$0xf]
    %v45 = vld [vmem:[#allocation5 + $0x14] sm:$0xf]
    %v46 = vld [vmem:[#allocation5 + $0x18] sm:$0xf]
    %v47 = vld [vmem:[#allocation5 + $0x1c] sm:$0xf]
    %v48 = vld [vmem:[#allocation5 + $0x20] sm:$0xf]
    %v49 = vld [vmem:[#allocation5 + $0x24] sm:$0xf]
    %v50 = vld [vmem:[#allocation5 + $0x28] sm:$0xf]
    %v51 = vld [vmem:[#allocation5 + $0x2c] sm:$0xf]
    %v52 = vld [vmem:[#allocation5 + $0x30] sm:$0xf]
    %v53 = vld [vmem:[#allocation5 + $0x34] sm:$0xf]
    %v54 = vld [vmem:[#allocation5 + $0x38] sm:$0xf]
    %v55 = vld [vmem:[#allocation5 + $0x3c] sm:$0xf]
    %v72 = vunpack.c.l.b16 %v40
    %v73 = vunpack.c.l.b16 %v41
    %v74 = vunpack.c.l.b16 %v42
    %v75 = vunpack.c.l.b16 %v43
    %v76 = vunpack.c.l.b16 %v44
    %v77 = vunpack.c.l.b16 %v45
    %v78 = vunpack.c.l.b16 %v46
    %v79 = vunpack.c.l.b16 %v47
    %v80 = vunpack.c.l.b16 %v48
    %v81 = vunpack.c.l.b16 %v49
    %v82 = vunpack.c.l.b16 %v50
    %v83 = vunpack.c.l.b16 %v51
    %v84 = vunpack.c.l.b16 %v52
    %v85 = vunpack.c.l.b16 %v53
    %v86 = vunpack.c.l.b16 %v54
    %v87 = vunpack.c.l.b16 %v55
    %v88 = vpack.c.b16 %v73, %v72
    %v89 = vpack.c.b16 %v75, %v74
    %v90 = vpack.c.b16 %v77, %v76
    %v91 = vpack.c.b16 %v79, %v78
    %v92 = vpack.c.b16 %v81, %v80
    %v93 = vpack.c.b16 %v83, %v82
    %v94 = vpack.c.b16 %v85, %v84
    %v95 = vpack.c.b16 %v87, %v86
    %104 = vmatprep.subr.bf16.mxu0 0
    %105 = vmatpush1.bf16.msra.mxu0 %v88
    %106 = vmatprep.subr.bf16.mxu0 0
    %107 = vmatpush1.bf16.msra.mxu0 %v89
    %108 = vmatprep.subr.bf16.mxu0 0
    %109 = vmatpush1.bf16.msra.mxu0 %v90
    %110 = vmatprep.subr.bf16.mxu0 0
    %111 = vmatpush1.bf16.msra.mxu0 %v91
    %112 = vmatprep.subr.bf16.mxu0 0
    %113 = vmatpush1.bf16.msra.mxu0 %v92
    %114 = vmatprep.subr.bf16.mxu0 0
    %115 = vmatpush1.bf16.msra.mxu0 %v93
    %116 = vmatprep.subr.bf16.mxu0 0
    %117 = vmatpush1.bf16.msra.mxu0 %v94
    %118 = vmatprep.subr.bf16.mxu0 0
    %119 = vmatpush1.bf16.msra.mxu0 %v95
    %120 = vmatprep.subr.bf16.mxu0 0
    %121 = vmatpush1.bf16.msra.mxu0 0
    %122 = vmatprep.subr.bf16.mxu0 0
    %123 = vmatpush1.bf16.msra.mxu0 0
    %124 = vmatprep.subr.bf16.mxu0 0
    %125 = vmatpush1.bf16.msra.mxu0 0
    %126 = vmatprep.subr.bf16.mxu0 0
    %127 = vmatpush1.bf16.msra.mxu0 0
    %128 = vmatprep.subr.bf16.mxu0 0
    %129 = vmatpush1.bf16.msra.mxu0 0
    %130 = vmatprep.subr.bf16.mxu0 0
    %131 = vmatpush1.bf16.msra.mxu0 0
    %132 = vmatprep.subr.bf16.mxu0 0
    %133 = vmatpush1.bf16.msra.mxu0 0
    %134 = vmatprep.subr.bf16.mxu0 0
    %135 = vmatpush1.bf16.msra.mxu0 0
    %136 = vmatprep.mubr.bf16.mxu0 0
    %137 = vmatmul.mubr.bf16.gmra.mrb[0].mxu0 %v39
    %v138 = vpop.f32.mrb[0].mxu0
    %v139 = vadd.f32 0.0, %v138
    %v140 = vpop.f32.mrb[0].mxu0
    %v141 = vpop.f32.mrb[0].mxu0
    %v142 = vpop.f32.mrb[0].mxu0
    %143 = vdwg.mxu0
    %144 = vst [vmem:[#allocation7] sm:$0xff] %v139
    // Predicated region
    $region18: #{dc_discriminator_forward.11} parent=1 // pred_check
      _
    $region19: #{dc_discriminator_forward.11} parent=1 // pred_check_branch
      %146 = sbr.rel (0) target = $region21
    $region20: #{dc_discriminator_forward.11} parent=1 // pred_region
      %s148 = ssub.s32 128, 128
      %149 = vsyncadd [#allocation4], %s148
      %s151 = sshll.u32 [#allocation7], 4
      %s152 = int_to_ptr.vmem [resolvable:$true] %s151
      %154 = dma.vmem_to_hbm [thread:$0]  %s152, 128, %s2, [#allocation4]
    $region21: #{dc_discriminator_forward.11} parent=1 // pred_fallthru
      _
    // Predicated region
    $region22: #{dc_discriminator_forward.11} parent=1 // pred_check
      _
    $region23: #{dc_discriminator_forward.11} parent=1 // pred_check_branch
      %156 = sbr.rel (0) target = $region25
    $region24: #{dc_discriminator_forward.11} parent=1 // pred_region
      %157 = dma.done [#allocation4], 128
    $region25: #{dc_discriminator_forward.11} parent=1 // pred_fallthru
      _
    %158 = vsyncpa [#allocation3], 1
    %159 = vsyncpa [#allocation6], 1
    %160 = vsyncpa [#allocation4], 1

</llo_original>
